<compile_context>
chip_gen: v5e
topology: v5e:2x2
jax: 0.10.0
libtpu: 0.0.40
codegen_flags: <defaults>
</compile_context>

<pallas_src>
import functools
import math

import jax
import jax.numpy as jnp
from jax.experimental import pallas as pl
from jax.experimental.pallas import tpu as pltpu  # noqa: F401  (TPU backend)

# ----------------------------- config -----------------------------------
VOCAB = 100
TYPE_VOCAB = 2
HIDDEN = 32           # small stand-in for 768
HEADS = 2
HEAD_DIM = HIDDEN // HEADS
FFN = 64
LAYERS = 2
NUM_CLASSES = 58      # matches nn.Linear(hidden_size, num_classes=58)
CLS_PAD = 128         # lane-dense classifier output; sliced to 58 outside
SEQ = 8
BATCH = 2
DR_RATE = 0.5         # nn.Dropout(p=dr_rate); eval mode => identity


# --------------------------- kernel helpers ------------------------------

def _layernorm(x, g, b):
    mu = jnp.mean(x, axis=-1, keepdims=True)
    var = jnp.mean((x - mu) ** 2, axis=-1, keepdims=True)
    return (x - mu) * jax.lax.rsqrt(var + 1e-12) * g + b


def _gelu(x):
    # tanh approximation (EUP tanh; no erf lowering risk inside the kernel).
    # TODO(synk): exact erf-form GELU for bit-parity with nn.GELU default.
    return 0.5 * x * (1.0 + jnp.tanh(0.7978845608028654 * (x + 0.044715 * x * x * x)))


# --------------------------- fused Pallas kernel --------------------------

def _fused_bert_kernel(x_ref, bias_ref, emb_g_ref, emb_b_ref,
                       wqkv_ref, bqkv_ref, wo_ref, bo_ref,
                       ln1_g_ref, ln1_b_ref, w1_ref, b1_ref,
                       w2_ref, b2_ref, ln2_g_ref, ln2_b_ref,
                       pool_w_ref, pool_b_ref, cls_w_ref, cls_b_ref,
                       out_ref, *, batch, seq, heads, head_dim, layers):
    hidden = heads * head_dim
    scale = 1.0 / math.sqrt(head_dim)

    # Precomputed additive bias over the flattened token axis:
    #   0 where (same batch AND key position is valid), -1e9 elsewhere.
    # This makes the (B*S, B*S) attention exactly block-diagonal per batch.
    bias = bias_ref[...]                                                  # (B*S, B*S)

    # ---- embedding layernorm ---------------------------------------------
    x = _layernorm(x_ref[...], emb_g_ref[...], emb_b_ref[...])           # (B*S, H)

    # ---- encoder layers (statically unrolled, weights VMEM-resident) ------
    for l in range(layers):
        # fused QKV projection: single (B*S, 3H) matmul + bias
        qkv = jnp.dot(x, wqkv_ref[l],
                      preferred_element_type=jnp.float32) + bqkv_ref[l]   # (B*S, 3H)

        head_outs = []
        for h in range(heads):
            c0 = h * head_dim
            q = qkv[:, c0:c0 + head_dim]                                  # (B*S, Dh)
            k = qkv[:, hidden + c0:hidden + c0 + head_dim]
            v = qkv[:, 2 * hidden + c0:2 * hidden + c0 + head_dim]
            s = jax.lax.dot_general(
                q, k, (((1,), (1,)), ((), ())),
                preferred_element_type=jnp.float32) * scale               # (B*S, B*S)
            s = s + bias                                                  # kill cross-batch / padded keys
            m = jnp.max(s, axis=-1, keepdims=True)
            p = jnp.exp(s - m)
            p = p * pl.reciprocal(jnp.sum(p, axis=-1, keepdims=True),
                                  approx=True)
            head_outs.append(
                jnp.dot(p, v, preferred_element_type=jnp.float32))        # (B*S, Dh)
        ctx = jnp.concatenate(head_outs, axis=-1)                         # (B*S, H)

        attn_out = jnp.dot(ctx, wo_ref[l],
                           preferred_element_type=jnp.float32) + bo_ref[l]
        x = _layernorm(x + attn_out, ln1_g_ref[l], ln1_b_ref[l])

        h1 = jnp.dot(x, w1_ref[l],
                     preferred_element_type=jnp.float32) + b1_ref[l]      # (B*S, FFN)
        h1 = _gelu(h1)
        ffn_out = jnp.dot(h1, w2_ref[l],
                          preferred_element_type=jnp.float32) + b2_ref[l]
        x = _layernorm(x + ffn_out, ln2_g_ref[l], ln2_b_ref[l])

    # ---- pooler (CLS token) + classifier -----------------------------------
    cls = jnp.concatenate([x[b * seq:b * seq + 1, :] for b in range(batch)],
                          axis=0)                                          # (B, H)
    pooled = jnp.tanh(
        jnp.dot(cls, pool_w_ref[...], preferred_element_type=jnp.float32)
        + pool_b_ref[...])
    # nn.Dropout(p=dr_rate) in eval mode is the identity.
    # TODO(synk): train-mode stochastic dropout (pltpu.prng_seed / prng_random_bits).
    out_ref[...] = (jnp.dot(pooled, cls_w_ref[...],
                            preferred_element_type=jnp.float32)
                    + cls_b_ref[...])                                      # (B, CLS_PAD)


# ----------------------------- forward wrapper ----------------------------

def bert_classifier_forward(params, token_ids, valid_length, segment_ids):
    batch, seq = token_ids.shape
    p = params

    # gen_attention_mask: attention_mask[i][:v] = 1 ; precompute one additive
    # bias over the flattened (B*S, B*S) token axis:
    #   same-batch & valid-key -> 0, else -1e9 (block-diagonal attention).
    key_valid = (jnp.arange(seq)[None, :]
                 < valid_length[:, None]).reshape(batch * seq)             # (B*S,)
    row_batch = jnp.repeat(jnp.arange(batch), seq)                         # (B*S,)
    same_batch = row_batch[:, None] == row_batch[None, :]                  # (B*S, B*S)
    mask_bias = jnp.where(same_batch & key_valid[None, :], 0.0,
                          -1e9).astype(jnp.float32)                        # (B*S, B*S)

    # embedding gathers stay in plain JAX (data-dependent gather)
    emb = (p["word_emb"][token_ids]
           + p["pos_emb"][:seq][None, :, :]
           + p["type_emb"][segment_ids.astype(jnp.int32)])                 # (B, S, H)
    emb = emb.reshape(batch * seq, HIDDEN)

    kernel = functools.partial(_fused_bert_kernel, batch=batch, seq=seq,
                               heads=HEADS, head_dim=HEAD_DIM, layers=LAYERS)
    logits_pad = pl.pallas_call(
        kernel,
        out_shape=jax.ShapeDtypeStruct((batch, CLS_PAD), jnp.float32),
    )(emb, mask_bias, p["emb_ln_g"], p["emb_ln_b"],
      p["wqkv"], p["bqkv"], p["wo"], p["bo"],
      p["ln1_g"], p["ln1_b"], p["w1"], p["b1"],
      p["w2"], p["b2"], p["ln2_g"], p["ln2_b"],
      p["pool_w"], p["pool_b"], p["cls_w"], p["cls_b"])
    return logits_pad[:, :NUM_CLASSES]                                     # (B, 58)


# ------------------------ deterministic params ----------------------------

class _KeyGen:
    def __init__(self, key):
        self._key = key

    def __call__(self):
        self._key, sub = jax.random.split(self._key)
        return sub


def init_params(key):
    kg = _KeyGen(key)

    def w(shape, scale=0.02):
        return scale * jax.random.normal(kg(), shape, dtype=jnp.float32)

    def zeros(shape):
        return jnp.zeros(shape, dtype=jnp.float32)

    def ones(shape):
        return jnp.ones(shape, dtype=jnp.float32)

    # classifier weight padded to CLS_PAD lanes (extra columns/bias are zero)
    cls_w = jnp.zeros((HIDDEN, CLS_PAD), jnp.float32)
    cls_w = cls_w.at[:, :NUM_CLASSES].set(w((HIDDEN, NUM_CLASSES)))

    return dict(
        word_emb=w((VOCAB, HIDDEN)),
        pos_emb=w((SEQ, HIDDEN)),
        type_emb=w((TYPE_VOCAB, HIDDEN)),
        emb_ln_g=ones((1, HIDDEN)), emb_ln_b=zeros((1, HIDDEN)),
        # per-layer stacks; weights pre-transposed to (din, dout),
        # biases pre-shaped to (1, dout) once at init (no per-forward w.T)
        wqkv=w((LAYERS, HIDDEN, 3 * HIDDEN)), bqkv=zeros((LAYERS, 1, 3 * HIDDEN)),
        wo=w((LAYERS, HIDDEN, HIDDEN)), bo=zeros((LAYERS, 1, HIDDEN)),
        ln1_g=ones((LAYERS, 1, HIDDEN)), ln1_b=zeros((LAYERS, 1, HIDDEN)),
        w1=w((LAYERS, HIDDEN, FFN)), b1=zeros((LAYERS, 1, FFN)),
        w2=w((LAYERS, FFN, HIDDEN)), b2=zeros((LAYERS, 1, HIDDEN)),
        ln2_g=ones((LAYERS, 1, HIDDEN)), ln2_b=zeros((LAYERS, 1, HIDDEN)),
        pool_w=w((HIDDEN, HIDDEN)), pool_b=zeros((1, HIDDEN)),
        cls_w=cls_w, cls_b=zeros((1, CLS_PAD)),
    )


# ------------------------------- main --------------------------------------

if __name__ == "__main__":
    root = jax.random.PRNGKey(0)
    k_params, k_tok, k_seg = jax.random.split(root, 3)

    params = init_params(k_params)

    token_ids = jax.random.randint(k_tok, (BATCH, SEQ), 0, VOCAB, dtype=jnp.int32)
    valid_length = jnp.array([5, SEQ], dtype=jnp.int32)
    segment_ids = jax.random.randint(k_seg, (BATCH, SEQ), 0, TYPE_VOCAB, dtype=jnp.int32)

    fwd = jax.jit(bert_classifier_forward)
    logits = jax.block_until_ready(fwd(params, token_ids, valid_length, segment_ids))

    assert logits.shape == (BATCH, NUM_CLASSES)
    assert bool(jnp.all(jnp.isfinite(logits)))
    print("KERNEL_OK")
</pallas_src>

<mosaic_0001>
module attributes {stable_mosaic.version = 11 : i64} {
  func.func @_fused_bert_kernel(%arg0: memref<16x32xf32, #tpu.memory_space<vmem>>, %arg1: memref<16x16xf32, #tpu.memory_space<vmem>>, %arg2: memref<1x32xf32, #tpu.memory_space<vmem>>, %arg3: memref<1x32xf32, #tpu.memory_space<vmem>>, %arg4: memref<2x32x96xf32, #tpu.memory_space<vmem>>, %arg5: memref<2x1x96xf32, #tpu.memory_space<vmem>>, %arg6: memref<2x32x32xf32, #tpu.memory_space<vmem>>, %arg7: memref<2x1x32xf32, #tpu.memory_space<vmem>>, %arg8: memref<2x1x32xf32, #tpu.memory_space<vmem>>, %arg9: memref<2x1x32xf32, #tpu.memory_space<vmem>>, %arg10: memref<2x32x64xf32, #tpu.memory_space<vmem>>, %arg11: memref<2x1x64xf32, #tpu.memory_space<vmem>>, %arg12: memref<2x64x32xf32, #tpu.memory_space<vmem>>, %arg13: memref<2x1x32xf32, #tpu.memory_space<vmem>>, %arg14: memref<2x1x32xf32, #tpu.memory_space<vmem>>, %arg15: memref<2x1x32xf32, #tpu.memory_space<vmem>>, %arg16: memref<32x32xf32, #tpu.memory_space<vmem>>, %arg17: memref<1x32xf32, #tpu.memory_space<vmem>>, %arg18: memref<32x128xf32, #tpu.memory_space<vmem>>, %arg19: memref<1x128xf32, #tpu.memory_space<vmem>>, %arg20: memref<2x128xf32, #tpu.memory_space<vmem>>) attributes {dimension_semantics = [], scalar_prefetch = 0 : i64, scratch_operands = 0 : i64, tpu.core_type = #tpu.core_type<tc>} {
    %c0 = arith.constant 0 : index
    %c0_0 = arith.constant 0 : index
    %0 = vector.load %arg1[%c0, %c0_0] : memref<16x16xf32, #tpu.memory_space<vmem>>, vector<16x16xf32>
    %c0_1 = arith.constant 0 : index
    %c0_2 = arith.constant 0 : index
    %1 = vector.load %arg0[%c0_1, %c0_2] : memref<16x32xf32, #tpu.memory_space<vmem>>, vector<16x32xf32>
    %c0_3 = arith.constant 0 : index
    %c0_4 = arith.constant 0 : index
    %2 = vector.load %arg2[%c0_3, %c0_4] : memref<1x32xf32, #tpu.memory_space<vmem>>, vector<1x32xf32>
    %c0_5 = arith.constant 0 : index
    %c0_6 = arith.constant 0 : index
    %3 = vector.load %arg3[%c0_5, %c0_6] : memref<1x32xf32, #tpu.memory_space<vmem>>, vector<1x32xf32>
    %cst = arith.constant dense<0.000000e+00> : vector<16xf32>
    %4 = vector.multi_reduction <add>, %1, %cst [1] : vector<16x32xf32> to vector<16xf32>
    %5 = vector.shape_cast %4 : vector<16xf32> to vector<16x1xf32>
    %cst_7 = arith.constant 3.200000e+01 : f32
    %6 = vector.broadcast %cst_7 : f32 to vector<16x1xf32>
    %7 = arith.divf %5, %6 : vector<16x1xf32>
    %8 = vector.broadcast %7 : vector<16x1xf32> to vector<16x32xf32>
    %9 = arith.subf %1, %8 : vector<16x32xf32>
    %10 = arith.mulf %9, %9 : vector<16x32xf32>
    %cst_8 = arith.constant dense<0.000000e+00> : vector<16xf32>
    %11 = vector.multi_reduction <add>, %10, %cst_8 [1] : vector<16x32xf32> to vector<16xf32>
    %12 = vector.shape_cast %11 : vector<16xf32> to vector<16x1xf32>
    %cst_9 = arith.constant 3.200000e+01 : f32
    %13 = vector.broadcast %cst_9 : f32 to vector<16x1xf32>
    %14 = arith.divf %12, %13 : vector<16x1xf32>
    %15 = vector.broadcast %7 : vector<16x1xf32> to vector<16x32xf32>
    %16 = arith.subf %1, %15 : vector<16x32xf32>
    %cst_10 = arith.constant 9.99999996E-13 : f32
    %17 = vector.broadcast %cst_10 : f32 to vector<16x1xf32>
    %18 = arith.addf %14, %17 : vector<16x1xf32>
    %19 = math.rsqrt %18 : vector<16x1xf32>
    %20 = vector.broadcast %19 : vector<16x1xf32> to vector<16x32xf32>
    %21 = arith.mulf %16, %20 : vector<16x32xf32>
    %22 = vector.broadcast %2 : vector<1x32xf32> to vector<16x32xf32>
    %23 = arith.mulf %21, %22 : vector<16x32xf32>
    %24 = vector.broadcast %3 : vector<1x32xf32> to vector<16x32xf32>
    %25 = arith.addf %23, %24 : vector<16x32xf32>
    %c0_11 = arith.constant 0 : index
    %c0_12 = arith.constant 0 : index
    %c0_13 = arith.constant 0 : index
    %26 = vector.load %arg4[%c0_11, %c0_12, %c0_13] : memref<2x32x96xf32, #tpu.memory_space<vmem>>, vector<1x32x96xf32>
    %27 = vector.shape_cast %26 : vector<1x32x96xf32> to vector<32x96xf32>
    %cst_14 = arith.constant dense<0.000000e+00> : vector<16x96xf32>
    %28 = tpu.matmul %25, %27, %cst_14 {dimension_numbers = #tpu.dot_dimension_numbers<[1], [0], [0], [1], [0, 0, 1, 1], [], []>} : vector<16x32xf32>, vector<32x96xf32>, vector<16x96xf32> -> vector<16x96xf32>
    %c0_15 = arith.constant 0 : index
    %c0_16 = arith.constant 0 : index
    %c0_17 = arith.constant 0 : index
    %29 = vector.load %arg5[%c0_15, %c0_16, %c0_17] : memref<2x1x96xf32, #tpu.memory_space<vmem>>, vector<1x1x96xf32>
    %30 = vector.shape_cast %29 : vector<1x1x96xf32> to vector<1x96xf32>
    %31 = vector.broadcast %30 : vector<1x96xf32> to vector<16x96xf32>
    %32 = arith.addf %28, %31 : vector<16x96xf32>
    %33 = vector.extract_strided_slice %32 {offsets = [0, 0], sizes = [16, 16], strides = [1, 1]} : vector<16x96xf32> to vector<16x16xf32>
    %34 = vector.extract_strided_slice %32 {offsets = [0, 32], sizes = [16, 16], strides = [1, 1]} : vector<16x96xf32> to vector<16x16xf32>
    %35 = vector.extract_strided_slice %32 {offsets = [0, 64], sizes = [16, 16], strides = [1, 1]} : vector<16x96xf32> to vector<16x16xf32>
    %cst_18 = arith.constant dense<0.000000e+00> : vector<16x16xf32>
    %36 = tpu.matmul %33, %34, %cst_18 {dimension_numbers = #tpu.dot_dimension_numbers<[1], [1], [0], [0], [0, 0, 1, 0], [], []>} : vector<16x16xf32>, vector<16x16xf32>, vector<16x16xf32> -> vector<16x16xf32>
    %cst_19 = arith.constant 2.500000e-01 : f32
    %37 = vector.broadcast %cst_19 : f32 to vector<16x16xf32>
    %38 = arith.mulf %36, %37 : vector<16x16xf32>
    %39 = arith.addf %38, %0 : vector<16x16xf32>
    %cst_20 = arith.constant dense<0xFF800000> : vector<16xf32>
    %40 = vector.multi_reduction <maximumf>, %39, %cst_20 [1] : vector<16x16xf32> to vector<16xf32>
    %41 = vector.shape_cast %40 : vector<16xf32> to vector<16x1xf32>
    %42 = vector.broadcast %41 : vector<16x1xf32> to vector<16x16xf32>
    %43 = arith.subf %39, %42 : vector<16x16xf32>
    %44 = math.exp %43 : vector<16x16xf32>
    %cst_21 = arith.constant dense<0.000000e+00> : vector<16xf32>
    %45 = vector.multi_reduction <add>, %44, %cst_21 [1] : vector<16x16xf32> to vector<16xf32>
    %46 = vector.shape_cast %45 : vector<16xf32> to vector<16x1xf32>
    %47 = tpu.reciprocal %46 {approx = true} : vector<16x1xf32> -> vector<16x1xf32>
    %48 = vector.broadcast %47 : vector<16x1xf32> to vector<16x16xf32>
    %49 = arith.mulf %44, %48 : vector<16x16xf32>
    %cst_22 = arith.constant dense<0.000000e+00> : vector<16x16xf32>
    %50 = tpu.matmul %49, %35, %cst_22 {dimension_numbers = #tpu.dot_dimension_numbers<[1], [0], [0], [1], [0, 0, 1, 1], [], []>} : vector<16x16xf32>, vector<16x16xf32>, vector<16x16xf32> -> vector<16x16xf32>
    %51 = vector.extract_strided_slice %32 {offsets = [0, 16], sizes = [16, 16], strides = [1, 1]} : vector<16x96xf32> to vector<16x16xf32>
    %52 = vector.extract_strided_slice %32 {offsets = [0, 48], sizes = [16, 16], strides = [1, 1]} : vector<16x96xf32> to vector<16x16xf32>
    %53 = vector.extract_strided_slice %32 {offsets = [0, 80], sizes = [16, 16], strides = [1, 1]} : vector<16x96xf32> to vector<16x16xf32>
    %cst_23 = arith.constant dense<0.000000e+00> : vector<16x16xf32>
    %54 = tpu.matmul %51, %52, %cst_23 {dimension_numbers = #tpu.dot_dimension_numbers<[1], [1], [0], [0], [0, 0, 1, 0], [], []>} : vector<16x16xf32>, vector<16x16xf32>, vector<16x16xf32> -> vector<16x16xf32>
    %cst_24 = arith.constant 2.500000e-01 : f32
    %55 = vector.broadcast %cst_24 : f32 to vector<16x16xf32>
    %56 = arith.mulf %54, %55 : vector<16x16xf32>
    %57 = arith.addf %56, %0 : vector<16x16xf32>
    %cst_25 = arith.constant dense<0xFF800000> : vector<16xf32>
    %58 = vector.multi_reduction <maximumf>, %57, %cst_25 [1] : vector<16x16xf32> to vector<16xf32>
    %59 = vector.shape_cast %58 : vector<16xf32> to vector<16x1xf32>
    %60 = vector.broadcast %59 : vector<16x1xf32> to vector<16x16xf32>
    %61 = arith.subf %57, %60 : vector<16x16xf32>
    %62 = math.exp %61 : vector<16x16xf32>
    %cst_26 = arith.constant dense<0.000000e+00> : vector<16xf32>
    %63 = vector.multi_reduction <add>, %62, %cst_26 [1] : vector<16x16xf32> to vector<16xf32>
    %64 = vector.shape_cast %63 : vector<16xf32> to vector<16x1xf32>
    %65 = tpu.reciprocal %64 {approx = true} : vector<16x1xf32> -> vector<16x1xf32>
    %66 = vector.broadcast %65 : vector<16x1xf32> to vector<16x16xf32>
    %67 = arith.mulf %62, %66 : vector<16x16xf32>
    %cst_27 = arith.constant dense<0.000000e+00> : vector<16x16xf32>
    %68 = tpu.matmul %67, %53, %cst_27 {dimension_numbers = #tpu.dot_dimension_numbers<[1], [0], [0], [1], [0, 0, 1, 1], [], []>} : vector<16x16xf32>, vector<16x16xf32>, vector<16x16xf32> -> vector<16x16xf32>
    %69 = tpu.concatenate %50, %68 in 1 : vector<16x16xf32>, vector<16x16xf32> -> vector<16x32xf32>
    %c0_28 = arith.constant 0 : index
    %c0_29 = arith.constant 0 : index
    %c0_30 = arith.constant 0 : index
    %70 = vector.load %arg6[%c0_28, %c0_29, %c0_30] : memref<2x32x32xf32, #tpu.memory_space<vmem>>, vector<1x32x32xf32>
    %71 = vector.shape_cast %70 : vector<1x32x32xf32> to vector<32x32xf32>
    %cst_31 = arith.constant dense<0.000000e+00> : vector<16x32xf32>
    %72 = tpu.matmul %69, %71, %cst_31 {dimension_numbers = #tpu.dot_dimension_numbers<[1], [0], [0], [1], [0, 0, 1, 1], [], []>} : vector<16x32xf32>, vector<32x32xf32>, vector<16x32xf32> -> vector<16x32xf32>
    %c0_32 = arith.constant 0 : index
    %c0_33 = arith.constant 0 : index
    %c0_34 = arith.constant 0 : index
    %73 = vector.load %arg7[%c0_32, %c0_33, %c0_34] : memref<2x1x32xf32, #tpu.memory_space<vmem>>, vector<1x1x32xf32>
    %74 = vector.shape_cast %73 : vector<1x1x32xf32> to vector<1x32xf32>
    %75 = vector.broadcast %74 : vector<1x32xf32> to vector<16x32xf32>
    %76 = arith.addf %72, %75 : vector<16x32xf32>
    %77 = arith.addf %25, %76 : vector<16x32xf32>
    %c0_35 = arith.constant 0 : index
    %c0_36 = arith.constant 0 : index
    %c0_37 = arith.constant 0 : index
    %78 = vector.load %arg8[%c0_35, %c0_36, %c0_37] : memref<2x1x32xf32, #tpu.memory_space<vmem>>, vector<1x1x32xf32>
    %79 = vector.shape_cast %78 : vector<1x1x32xf32> to vector<1x32xf32>
    %c0_38 = arith.constant 0 : index
    %c0_39 = arith.constant 0 : index
    %c0_40 = arith.constant 0 : index
    %80 = vector.load %arg9[%c0_38, %c0_39, %c0_40] : memref<2x1x32xf32, #tpu.memory_space<vmem>>, vector<1x1x32xf32>
    %81 = vector.shape_cast %80 : vector<1x1x32xf32> to vector<1x32xf32>
    %cst_41 = arith.constant dense<0.000000e+00> : vector<16xf32>
    %82 = vector.multi_reduction <add>, %77, %cst_41 [1] : vector<16x32xf32> to vector<16xf32>
    %83 = vector.shape_cast %82 : vector<16xf32> to vector<16x1xf32>
    %cst_42 = arith.constant 3.200000e+01 : f32
    %84 = vector.broadcast %cst_42 : f32 to vector<16x1xf32>
    %85 = arith.divf %83, %84 : vector<16x1xf32>
    %86 = vector.broadcast %85 : vector<16x1xf32> to vector<16x32xf32>
    %87 = arith.subf %77, %86 : vector<16x32xf32>
    %88 = arith.mulf %87, %87 : vector<16x32xf32>
    %cst_43 = arith.constant dense<0.000000e+00> : vector<16xf32>
    %89 = vector.multi_reduction <add>, %88, %cst_43 [1] : vector<16x32xf32> to vector<16xf32>
    %90 = vector.shape_cast %89 : vector<16xf32> to vector<16x1xf32>
    %cst_44 = arith.constant 3.200000e+01 : f32
    %91 = vector.broadcast %cst_44 : f32 to vector<16x1xf32>
    %92 = arith.divf %90, %91 : vector<16x1xf32>
    %93 = vector.broadcast %85 : vector<16x1xf32> to vector<16x32xf32>
    %94 = arith.subf %77, %93 : vector<16x32xf32>
    %cst_45 = arith.constant 9.99999996E-13 : f32
    %95 = vector.broadcast %cst_45 : f32 to vector<16x1xf32>
    %96 = arith.addf %92, %95 : vector<16x1xf32>
    %97 = math.rsqrt %96 : vector<16x1xf32>
    %98 = vector.broadcast %97 : vector<16x1xf32> to vector<16x32xf32>
    %99 = arith.mulf %94, %98 : vector<16x32xf32>
    %100 = vector.broadcast %79 : vector<1x32xf32> to vector<16x32xf32>
    %101 = arith.mulf %99, %100 : vector<16x32xf32>
    %102 = vector.broadcast %81 : vector<1x32xf32> to vector<16x32xf32>
    %103 = arith.addf %101, %102 : vector<16x32xf32>
    %c0_46 = arith.constant 0 : index
    %c0_47 = arith.constant 0 : index
    %c0_48 = arith.constant 0 : index
    %104 = vector.load %arg10[%c0_46, %c0_47, %c0_48] : memref<2x32x64xf32, #tpu.memory_space<vmem>>, vector<1x32x64xf32>
    %105 = vector.shape_cast %104 : vector<1x32x64xf32> to vector<32x64xf32>
    %cst_49 = arith.constant dense<0.000000e+00> : vector<16x64xf32>
    %106 = tpu.matmul %103, %105, %cst_49 {dimension_numbers = #tpu.dot_dimension_numbers<[1], [0], [0], [1], [0, 0, 1, 1], [], []>} : vector<16x32xf32>, vector<32x64xf32>, vector<16x64xf32> -> vector<16x64xf32>
    %c0_50 = arith.constant 0 : index
    %c0_51 = arith.constant 0 : index
    %c0_52 = arith.constant 0 : index
    %107 = vector.load %arg11[%c0_50, %c0_51, %c0_52] : memref<2x1x64xf32, #tpu.memory_space<vmem>>, vector<1x1x64xf32>
    %108 = vector.shape_cast %107 : vector<1x1x64xf32> to vector<1x64xf32>
    %109 = vector.broadcast %108 : vector<1x64xf32> to vector<16x64xf32>
    %110 = arith.addf %106, %109 : vector<16x64xf32>
    %cst_53 = arith.constant 5.000000e-01 : f32
    %111 = vector.broadcast %cst_53 : f32 to vector<16x64xf32>
    %112 = arith.mulf %111, %110 : vector<16x64xf32>
    %cst_54 = arith.constant 4.471500e-02 : f32
    %113 = vector.broadcast %cst_54 : f32 to vector<16x64xf32>
    %114 = arith.mulf %113, %110 : vector<16x64xf32>
    %115 = arith.mulf %114, %110 : vector<16x64xf32>
    %116 = arith.mulf %115, %110 : vector<16x64xf32>
    %117 = arith.addf %110, %116 : vector<16x64xf32>
    %cst_55 = arith.constant 0.797884583 : f32
    %118 = vector.broadcast %cst_55 : f32 to vector<16x64xf32>
    %119 = arith.mulf %118, %117 : vector<16x64xf32>
    %120 = math.tanh %119 : vector<16x64xf32>
    %cst_56 = arith.constant 1.000000e+00 : f32
    %121 = vector.broadcast %cst_56 : f32 to vector<16x64xf32>
    %122 = arith.addf %121, %120 : vector<16x64xf32>
    %123 = arith.mulf %112, %122 : vector<16x64xf32>
    %c0_57 = arith.constant 0 : index
    %c0_58 = arith.constant 0 : index
    %c0_59 = arith.constant 0 : index
    %124 = vector.load %arg12[%c0_57, %c0_58, %c0_59] : memref<2x64x32xf32, #tpu.memory_space<vmem>>, vector<1x64x32xf32>
    %125 = vector.shape_cast %124 : vector<1x64x32xf32> to vector<64x32xf32>
    %cst_60 = arith.constant dense<0.000000e+00> : vector<16x32xf32>
    %126 = tpu.matmul %123, %125, %cst_60 {dimension_numbers = #tpu.dot_dimension_numbers<[1], [0], [0], [1], [0, 0, 1, 1], [], []>} : vector<16x64xf32>, vector<64x32xf32>, vector<16x32xf32> -> vector<16x32xf32>
    %c0_61 = arith.constant 0 : index
    %c0_62 = arith.constant 0 : index
    %c0_63 = arith.constant 0 : index
    %127 = vector.load %arg13[%c0_61, %c0_62, %c0_63] : memref<2x1x32xf32, #tpu.memory_space<vmem>>, vector<1x1x32xf32>
    %128 = vector.shape_cast %127 : vector<1x1x32xf32> to vector<1x32xf32>
    %129 = vector.broadcast %128 : vector<1x32xf32> to vector<16x32xf32>
    %130 = arith.addf %126, %129 : vector<16x32xf32>
    %131 = arith.addf %103, %130 : vector<16x32xf32>
    %c0_64 = arith.constant 0 : index
    %c0_65 = arith.constant 0 : index
    %c0_66 = arith.constant 0 : index
    %132 = vector.load %arg14[%c0_64, %c0_65, %c0_66] : memref<2x1x32xf32, #tpu.memory_space<vmem>>, vector<1x1x32xf32>
    %133 = vector.shape_cast %132 : vector<1x1x32xf32> to vector<1x32xf32>
    %c0_67 = arith.constant 0 : index
    %c0_68 = arith.constant 0 : index
    %c0_69 = arith.constant 0 : index
    %134 = vector.load %arg15[%c0_67, %c0_68, %c0_69] : memref<2x1x32xf32, #tpu.memory_space<vmem>>, vector<1x1x32xf32>
    %135 = vector.shape_cast %134 : vector<1x1x32xf32> to vector<1x32xf32>
    %cst_70 = arith.constant dense<0.000000e+00> : vector<16xf32>
    %136 = vector.multi_reduction <add>, %131, %cst_70 [1] : vector<16x32xf32> to vector<16xf32>
    %137 = vector.shape_cast %136 : vector<16xf32> to vector<16x1xf32>
    %cst_71 = arith.constant 3.200000e+01 : f32
    %138 = vector.broadcast %cst_71 : f32 to vector<16x1xf32>
    %139 = arith.divf %137, %138 : vector<16x1xf32>
    %140 = vector.broadcast %139 : vector<16x1xf32> to vector<16x32xf32>
    %141 = arith.subf %131, %140 : vector<16x32xf32>
    %142 = arith.mulf %141, %141 : vector<16x32xf32>
    %cst_72 = arith.constant dense<0.000000e+00> : vector<16xf32>
    %143 = vector.multi_reduction <add>, %142, %cst_72 [1] : vector<16x32xf32> to vector<16xf32>
    %144 = vector.shape_cast %143 : vector<16xf32> to vector<16x1xf32>
    %cst_73 = arith.constant 3.200000e+01 : f32
    %145 = vector.broadcast %cst_73 : f32 to vector<16x1xf32>
    %146 = arith.divf %144, %145 : vector<16x1xf32>
    %147 = vector.broadcast %139 : vector<16x1xf32> to vector<16x32xf32>
    %148 = arith.subf %131, %147 : vector<16x32xf32>
    %cst_74 = arith.constant 9.99999996E-13 : f32
    %149 = vector.broadcast %cst_74 : f32 to vector<16x1xf32>
    %150 = arith.addf %146, %149 : vector<16x1xf32>
    %151 = math.rsqrt %150 : vector<16x1xf32>
    %152 = vector.broadcast %151 : vector<16x1xf32> to vector<16x32xf32>
    %153 = arith.mulf %148, %152 : vector<16x32xf32>
    %154 = vector.broadcast %133 : vector<1x32xf32> to vector<16x32xf32>
    %155 = arith.mulf %153, %154 : vector<16x32xf32>
    %156 = vector.broadcast %135 : vector<1x32xf32> to vector<16x32xf32>
    %157 = arith.addf %155, %156 : vector<16x32xf32>
    %c1 = arith.constant 1 : index
    %c0_75 = arith.constant 0 : index
    %c0_76 = arith.constant 0 : index
    %158 = vector.load %arg4[%c1, %c0_75, %c0_76] : memref<2x32x96xf32, #tpu.memory_space<vmem>>, vector<1x32x96xf32>
    %159 = vector.shape_cast %158 : vector<1x32x96xf32> to vector<32x96xf32>
    %cst_77 = arith.constant dense<0.000000e+00> : vector<16x96xf32>
    %160 = tpu.matmul %157, %159, %cst_77 {dimension_numbers = #tpu.dot_dimension_numbers<[1], [0], [0], [1], [0, 0, 1, 1], [], []>} : vector<16x32xf32>, vector<32x96xf32>, vector<16x96xf32> -> vector<16x96xf32>
    %c1_78 = arith.constant 1 : index
    %c0_79 = arith.constant 0 : index
    %c0_80 = arith.constant 0 : index
    %161 = vector.load %arg5[%c1_78, %c0_79, %c0_80] : memref<2x1x96xf32, #tpu.memory_space<vmem>>, vector<1x1x96xf32>
    %162 = vector.shape_cast %161 : vector<1x1x96xf32> to vector<1x96xf32>
    %163 = vector.broadcast %162 : vector<1x96xf32> to vector<16x96xf32>
    %164 = arith.addf %160, %163 : vector<16x96xf32>
    %165 = vector.extract_strided_slice %164 {offsets = [0, 0], sizes = [16, 16], strides = [1, 1]} : vector<16x96xf32> to vector<16x16xf32>
    %166 = vector.extract_strided_slice %164 {offsets = [0, 32], sizes = [16, 16], strides = [1, 1]} : vector<16x96xf32> to vector<16x16xf32>
    %167 = vector.extract_strided_slice %164 {offsets = [0, 64], sizes = [16, 16], strides = [1, 1]} : vector<16x96xf32> to vector<16x16xf32>
    %cst_81 = arith.constant dense<0.000000e+00> : vector<16x16xf32>
    %168 = tpu.matmul %165, %166, %cst_81 {dimension_numbers = #tpu.dot_dimension_numbers<[1], [1], [0], [0], [0, 0, 1, 0], [], []>} : vector<16x16xf32>, vector<16x16xf32>, vector<16x16xf32> -> vector<16x16xf32>
    %cst_82 = arith.constant 2.500000e-01 : f32
    %169 = vector.broadcast %cst_82 : f32 to vector<16x16xf32>
    %170 = arith.mulf %168, %169 : vector<16x16xf32>
    %171 = arith.addf %170, %0 : vector<16x16xf32>
    %cst_83 = arith.constant dense<0xFF800000> : vector<16xf32>
    %172 = vector.multi_reduction <maximumf>, %171, %cst_83 [1] : vector<16x16xf32> to vector<16xf32>
    %173 = vector.shape_cast %172 : vector<16xf32> to vector<16x1xf32>
    %174 = vector.broadcast %173 : vector<16x1xf32> to vector<16x16xf32>
    %175 = arith.subf %171, %174 : vector<16x16xf32>
    %176 = math.exp %175 : vector<16x16xf32>
    %cst_84 = arith.constant dense<0.000000e+00> : vector<16xf32>
    %177 = vector.multi_reduction <add>, %176, %cst_84 [1] : vector<16x16xf32> to vector<16xf32>
    %178 = vector.shape_cast %177 : vector<16xf32> to vector<16x1xf32>
    %179 = tpu.reciprocal %178 {approx = true} : vector<16x1xf32> -> vector<16x1xf32>
    %180 = vector.broadcast %179 : vector<16x1xf32> to vector<16x16xf32>
    %181 = arith.mulf %176, %180 : vector<16x16xf32>
    %cst_85 = arith.constant dense<0.000000e+00> : vector<16x16xf32>
    %182 = tpu.matmul %181, %167, %cst_85 {dimension_numbers = #tpu.dot_dimension_numbers<[1], [0], [0], [1], [0, 0, 1, 1], [], []>} : vector<16x16xf32>, vector<16x16xf32>, vector<16x16xf32> -> vector<16x16xf32>
    %183 = vector.extract_strided_slice %164 {offsets = [0, 16], sizes = [16, 16], strides = [1, 1]} : vector<16x96xf32> to vector<16x16xf32>
    %184 = vector.extract_strided_slice %164 {offsets = [0, 48], sizes = [16, 16], strides = [1, 1]} : vector<16x96xf32> to vector<16x16xf32>
    %185 = vector.extract_strided_slice %164 {offsets = [0, 80], sizes = [16, 16], strides = [1, 1]} : vector<16x96xf32> to vector<16x16xf32>
    %cst_86 = arith.constant dense<0.000000e+00> : vector<16x16xf32>
    %186 = tpu.matmul %183, %184, %cst_86 {dimension_numbers = #tpu.dot_dimension_numbers<[1], [1], [0], [0], [0, 0, 1, 0], [], []>} : vector<16x16xf32>, vector<16x16xf32>, vector<16x16xf32> -> vector<16x16xf32>
    %cst_87 = arith.constant 2.500000e-01 : f32
    %187 = vector.broadcast %cst_87 : f32 to vector<16x16xf32>
    %188 = arith.mulf %186, %187 : vector<16x16xf32>
    %189 = arith.addf %188, %0 : vector<16x16xf32>
    %cst_88 = arith.constant dense<0xFF800000> : vector<16xf32>
    %190 = vector.multi_reduction <maximumf>, %189, %cst_88 [1] : vector<16x16xf32> to vector<16xf32>
    %191 = vector.shape_cast %190 : vector<16xf32> to vector<16x1xf32>
    %192 = vector.broadcast %191 : vector<16x1xf32> to vector<16x16xf32>
    %193 = arith.subf %189, %192 : vector<16x16xf32>
    %194 = math.exp %193 : vector<16x16xf32>
    %cst_89 = arith.constant dense<0.000000e+00> : vector<16xf32>
    %195 = vector.multi_reduction <add>, %194, %cst_89 [1] : vector<16x16xf32> to vector<16xf32>
    %196 = vector.shape_cast %195 : vector<16xf32> to vector<16x1xf32>
    %197 = tpu.reciprocal %196 {approx = true} : vector<16x1xf32> -> vector<16x1xf32>
    %198 = vector.broadcast %197 : vector<16x1xf32> to vector<16x16xf32>
    %199 = arith.mulf %194, %198 : vector<16x16xf32>
    %cst_90 = arith.constant dense<0.000000e+00> : vector<16x16xf32>
    %200 = tpu.matmul %199, %185, %cst_90 {dimension_numbers = #tpu.dot_dimension_numbers<[1], [0], [0], [1], [0, 0, 1, 1], [], []>} : vector<16x16xf32>, vector<16x16xf32>, vector<16x16xf32> -> vector<16x16xf32>
    %201 = tpu.concatenate %182, %200 in 1 : vector<16x16xf32>, vector<16x16xf32> -> vector<16x32xf32>
    %c1_91 = arith.constant 1 : index
    %c0_92 = arith.constant 0 : index
    %c0_93 = arith.constant 0 : index
    %202 = vector.load %arg6[%c1_91, %c0_92, %c0_93] : memref<2x32x32xf32, #tpu.memory_space<vmem>>, vector<1x32x32xf32>
    %203 = vector.shape_cast %202 : vector<1x32x32xf32> to vector<32x32xf32>
    %cst_94 = arith.constant dense<0.000000e+00> : vector<16x32xf32>
    %204 = tpu.matmul %201, %203, %cst_94 {dimension_numbers = #tpu.dot_dimension_numbers<[1], [0], [0], [1], [0, 0, 1, 1], [], []>} : vector<16x32xf32>, vector<32x32xf32>, vector<16x32xf32> -> vector<16x32xf32>
    %c1_95 = arith.constant 1 : index
    %c0_96 = arith.constant 0 : index
    %c0_97 = arith.constant 0 : index
    %205 = vector.load %arg7[%c1_95, %c0_96, %c0_97] : memref<2x1x32xf32, #tpu.memory_space<vmem>>, vector<1x1x32xf32>
    %206 = vector.shape_cast %205 : vector<1x1x32xf32> to vector<1x32xf32>
    %207 = vector.broadcast %206 : vector<1x32xf32> to vector<16x32xf32>
    %208 = arith.addf %204, %207 : vector<16x32xf32>
    %209 = arith.addf %157, %208 : vector<16x32xf32>
    %c1_98 = arith.constant 1 : index
    %c0_99 = arith.constant 0 : index
    %c0_100 = arith.constant 0 : index
    %210 = vector.load %arg8[%c1_98, %c0_99, %c0_100] : memref<2x1x32xf32, #tpu.memory_space<vmem>>, vector<1x1x32xf32>
    %211 = vector.shape_cast %210 : vector<1x1x32xf32> to vector<1x32xf32>
    %c1_101 = arith.constant 1 : index
    %c0_102 = arith.constant 0 : index
    %c0_103 = arith.constant 0 : index
    %212 = vector.load %arg9[%c1_101, %c0_102, %c0_103] : memref<2x1x32xf32, #tpu.memory_space<vmem>>, vector<1x1x32xf32>
    %213 = vector.shape_cast %212 : vector<1x1x32xf32> to vector<1x32xf32>
    %cst_104 = arith.constant dense<0.000000e+00> : vector<16xf32>
    %214 = vector.multi_reduction <add>, %209, %cst_104 [1] : vector<16x32xf32> to vector<16xf32>
    %215 = vector.shape_cast %214 : vector<16xf32> to vector<16x1xf32>
    %cst_105 = arith.constant 3.200000e+01 : f32
    %216 = vector.broadcast %cst_105 : f32 to vector<16x1xf32>
    %217 = arith.divf %215, %216 : vector<16x1xf32>
    %218 = vector.broadcast %217 : vector<16x1xf32> to vector<16x32xf32>
    %219 = arith.subf %209, %218 : vector<16x32xf32>
    %220 = arith.mulf %219, %219 : vector<16x32xf32>
    %cst_106 = arith.constant dense<0.000000e+00> : vector<16xf32>
    %221 = vector.multi_reduction <add>, %220, %cst_106 [1] : vector<16x32xf32> to vector<16xf32>
    %222 = vector.shape_cast %221 : vector<16xf32> to vector<16x1xf32>
    %cst_107 = arith.constant 3.200000e+01 : f32
    %223 = vector.broadcast %cst_107 : f32 to vector<16x1xf32>
    %224 = arith.divf %222, %223 : vector<16x1xf32>
    %225 = vector.broadcast %217 : vector<16x1xf32> to vector<16x32xf32>
    %226 = arith.subf %209, %225 : vector<16x32xf32>
    %cst_108 = arith.constant 9.99999996E-13 : f32
    %227 = vector.broadcast %cst_108 : f32 to vector<16x1xf32>
    %228 = arith.addf %224, %227 : vector<16x1xf32>
    %229 = math.rsqrt %228 : vector<16x1xf32>
    %230 = vector.broadcast %229 : vector<16x1xf32> to vector<16x32xf32>
    %231 = arith.mulf %226, %230 : vector<16x32xf32>
    %232 = vector.broadcast %211 : vector<1x32xf32> to vector<16x32xf32>
    %233 = arith.mulf %231, %232 : vector<16x32xf32>
    %234 = vector.broadcast %213 : vector<1x32xf32> to vector<16x32xf32>
    %235 = arith.addf %233, %234 : vector<16x32xf32>
    %c1_109 = arith.constant 1 : index
    %c0_110 = arith.constant 0 : index
    %c0_111 = arith.constant 0 : index
    %236 = vector.load %arg10[%c1_109, %c0_110, %c0_111] : memref<2x32x64xf32, #tpu.memory_space<vmem>>, vector<1x32x64xf32>
    %237 = vector.shape_cast %236 : vector<1x32x64xf32> to vector<32x64xf32>
    %cst_112 = arith.constant dense<0.000000e+00> : vector<16x64xf32>
    %238 = tpu.matmul %235, %237, %cst_112 {dimension_numbers = #tpu.dot_dimension_numbers<[1], [0], [0], [1], [0, 0, 1, 1], [], []>} : vector<16x32xf32>, vector<32x64xf32>, vector<16x64xf32> -> vector<16x64xf32>
    %c1_113 = arith.constant 1 : index
    %c0_114 = arith.constant 0 : index
    %c0_115 = arith.constant 0 : index
    %239 = vector.load %arg11[%c1_113, %c0_114, %c0_115] : memref<2x1x64xf32, #tpu.memory_space<vmem>>, vector<1x1x64xf32>
    %240 = vector.shape_cast %239 : vector<1x1x64xf32> to vector<1x64xf32>
    %241 = vector.broadcast %240 : vector<1x64xf32> to vector<16x64xf32>
    %242 = arith.addf %238, %241 : vector<16x64xf32>
    %cst_116 = arith.constant 5.000000e-01 : f32
    %243 = vector.broadcast %cst_116 : f32 to vector<16x64xf32>
    %244 = arith.mulf %243, %242 : vector<16x64xf32>
    %cst_117 = arith.constant 4.471500e-02 : f32
    %245 = vector.broadcast %cst_117 : f32 to vector<16x64xf32>
    %246 = arith.mulf %245, %242 : vector<16x64xf32>
    %247 = arith.mulf %246, %242 : vector<16x64xf32>
    %248 = arith.mulf %247, %242 : vector<16x64xf32>
    %249 = arith.addf %242, %248 : vector<16x64xf32>
    %cst_118 = arith.constant 0.797884583 : f32
    %250 = vector.broadcast %cst_118 : f32 to vector<16x64xf32>
    %251 = arith.mulf %250, %249 : vector<16x64xf32>
    %252 = math.tanh %251 : vector<16x64xf32>
    %cst_119 = arith.constant 1.000000e+00 : f32
    %253 = vector.broadcast %cst_119 : f32 to vector<16x64xf32>
    %254 = arith.addf %253, %252 : vector<16x64xf32>
    %255 = arith.mulf %244, %254 : vector<16x64xf32>
    %c1_120 = arith.constant 1 : index
    %c0_121 = arith.constant 0 : index
    %c0_122 = arith.constant 0 : index
    %256 = vector.load %arg12[%c1_120, %c0_121, %c0_122] : memref<2x64x32xf32, #tpu.memory_space<vmem>>, vector<1x64x32xf32>
    %257 = vector.shape_cast %256 : vector<1x64x32xf32> to vector<64x32xf32>
    %cst_123 = arith.constant dense<0.000000e+00> : vector<16x32xf32>
    %258 = tpu.matmul %255, %257, %cst_123 {dimension_numbers = #tpu.dot_dimension_numbers<[1], [0], [0], [1], [0, 0, 1, 1], [], []>} : vector<16x64xf32>, vector<64x32xf32>, vector<16x32xf32> -> vector<16x32xf32>
    %c1_124 = arith.constant 1 : index
    %c0_125 = arith.constant 0 : index
    %c0_126 = arith.constant 0 : index
    %259 = vector.load %arg13[%c1_124, %c0_125, %c0_126] : memref<2x1x32xf32, #tpu.memory_space<vmem>>, vector<1x1x32xf32>
    %260 = vector.shape_cast %259 : vector<1x1x32xf32> to vector<1x32xf32>
    %261 = vector.broadcast %260 : vector<1x32xf32> to vector<16x32xf32>
    %262 = arith.addf %258, %261 : vector<16x32xf32>
    %263 = arith.addf %235, %262 : vector<16x32xf32>
    %c1_127 = arith.constant 1 : index
    %c0_128 = arith.constant 0 : index
    %c0_129 = arith.constant 0 : index
    %264 = vector.load %arg14[%c1_127, %c0_128, %c0_129] : memref<2x1x32xf32, #tpu.memory_space<vmem>>, vector<1x1x32xf32>
    %265 = vector.shape_cast %264 : vector<1x1x32xf32> to vector<1x32xf32>
    %c1_130 = arith.constant 1 : index
    %c0_131 = arith.constant 0 : index
    %c0_132 = arith.constant 0 : index
    %266 = vector.load %arg15[%c1_130, %c0_131, %c0_132] : memref<2x1x32xf32, #tpu.memory_space<vmem>>, vector<1x1x32xf32>
    %267 = vector.shape_cast %266 : vector<1x1x32xf32> to vector<1x32xf32>
    %cst_133 = arith.constant dense<0.000000e+00> : vector<16xf32>
    %268 = vector.multi_reduction <add>, %263, %cst_133 [1] : vector<16x32xf32> to vector<16xf32>
    %269 = vector.shape_cast %268 : vector<16xf32> to vector<16x1xf32>
    %cst_134 = arith.constant 3.200000e+01 : f32
    %270 = vector.broadcast %cst_134 : f32 to vector<16x1xf32>
    %271 = arith.divf %269, %270 : vector<16x1xf32>
    %272 = vector.broadcast %271 : vector<16x1xf32> to vector<16x32xf32>
    %273 = arith.subf %263, %272 : vector<16x32xf32>
    %274 = arith.mulf %273, %273 : vector<16x32xf32>
    %cst_135 = arith.constant dense<0.000000e+00> : vector<16xf32>
    %275 = vector.multi_reduction <add>, %274, %cst_135 [1] : vector<16x32xf32> to vector<16xf32>
    %276 = vector.shape_cast %275 : vector<16xf32> to vector<16x1xf32>
    %cst_136 = arith.constant 3.200000e+01 : f32
    %277 = vector.broadcast %cst_136 : f32 to vector<16x1xf32>
    %278 = arith.divf %276, %277 : vector<16x1xf32>
    %279 = vector.broadcast %271 : vector<16x1xf32> to vector<16x32xf32>
    %280 = arith.subf %263, %279 : vector<16x32xf32>
    %cst_137 = arith.constant 9.99999996E-13 : f32
    %281 = vector.broadcast %cst_137 : f32 to vector<16x1xf32>
    %282 = arith.addf %278, %281 : vector<16x1xf32>
    %283 = math.rsqrt %282 : vector<16x1xf32>
    %284 = vector.broadcast %283 : vector<16x1xf32> to vector<16x32xf32>
    %285 = arith.mulf %280, %284 : vector<16x32xf32>
    %286 = vector.broadcast %265 : vector<1x32xf32> to vector<16x32xf32>
    %287 = arith.mulf %285, %286 : vector<16x32xf32>
    %288 = vector.broadcast %267 : vector<1x32xf32> to vector<16x32xf32>
    %289 = arith.addf %287, %288 : vector<16x32xf32>
    %290 = vector.extract_strided_slice %289 {offsets = [0, 0], sizes = [1, 32], strides = [1, 1]} : vector<16x32xf32> to vector<1x32xf32>
    %291 = vector.extract_strided_slice %289 {offsets = [8, 0], sizes = [1, 32], strides = [1, 1]} : vector<16x32xf32> to vector<1x32xf32>
    %292 = tpu.concatenate %290, %291 in 0 : vector<1x32xf32>, vector<1x32xf32> -> vector<2x32xf32>
    %c0_138 = arith.constant 0 : index
    %c0_139 = arith.constant 0 : index
    %293 = vector.load %arg16[%c0_138, %c0_139] : memref<32x32xf32, #tpu.memory_space<vmem>>, vector<32x32xf32>
    %cst_140 = arith.constant dense<0.000000e+00> : vector<2x32xf32>
    %294 = tpu.matmul %292, %293, %cst_140 {dimension_numbers = #tpu.dot_dimension_numbers<[1], [0], [0], [1], [0, 0, 1, 1], [], []>} : vector<2x32xf32>, vector<32x32xf32>, vector<2x32xf32> -> vector<2x32xf32>
    %c0_141 = arith.constant 0 : index
    %c0_142 = arith.constant 0 : index
    %295 = vector.load %arg17[%c0_141, %c0_142] : memref<1x32xf32, #tpu.memory_space<vmem>>, vector<1x32xf32>
    %296 = vector.broadcast %295 : vector<1x32xf32> to vector<2x32xf32>
    %297 = arith.addf %294, %296 : vector<2x32xf32>
    %298 = math.tanh %297 : vector<2x32xf32>
    %c0_143 = arith.constant 0 : index
    %c0_144 = arith.constant 0 : index
    %299 = vector.load %arg18[%c0_143, %c0_144] : memref<32x128xf32, #tpu.memory_space<vmem>>, vector<32x128xf32>
    %cst_145 = arith.constant dense<0.000000e+00> : vector<2x128xf32>
    %300 = tpu.matmul %298, %299, %cst_145 {dimension_numbers = #tpu.dot_dimension_numbers<[1], [0], [0], [1], [0, 0, 1, 1], [], []>} : vector<2x32xf32>, vector<32x128xf32>, vector<2x128xf32> -> vector<2x128xf32>
    %c0_146 = arith.constant 0 : index
    %c0_147 = arith.constant 0 : index
    %301 = vector.load %arg19[%c0_146, %c0_147] : memref<1x128xf32, #tpu.memory_space<vmem>>, vector<1x128xf32>
    %302 = vector.broadcast %301 : vector<1x128xf32> to vector<2x128xf32>
    %303 = arith.addf %300, %302 : vector<2x128xf32>
    %c0_148 = arith.constant 0 : index
    %c0_149 = arith.constant 0 : index
    %304 = vector.load %arg20[%c0_148, %c0_149] : memref<2x128xf32, #tpu.memory_space<vmem>>, vector<2x128xf32>
    tpu.vector_store %arg20[%c0_148, %c0_149], %303 {strides = array<i32>} : memref<2x128xf32, #tpu.memory_space<vmem>>, vector<2x128xf32>,
    return
  }
}

</mosaic_0001>

<llo_original>
// kernel: bert_classifier_forward.1
$region0: #{bert_classifier_forward.1}
  #allocation0 [shape = 'u32[]', space=smem, size = 0x4, offset = 0x4, fixed_abs, tag = 'smem constant byte address 0x4 - core index']
  #allocation1 [shape = 'u32[72,128]{1,0:T(1,128)}', space=vmem, size = 0x9000, scoped, tag = 'internal scratch']
  %s0 = inlined_call_operand.vmem [shape: f32[16,32], index: 0, kind: input, shape index: {}]
  %s1 = inlined_call_operand.vmem [shape: f32[16,16], index: 1, kind: input, shape index: {}]
  %s2 = inlined_call_operand.vmem [shape: f32[1,32], index: 2, kind: input, shape index: {}]
  %s3 = inlined_call_operand.vmem [shape: f32[1,32], index: 3, kind: input, shape index: {}]
  %s4 = inlined_call_operand.vmem [shape: f32[2,32,96], index: 4, kind: input, shape index: {}]
  %s5 = inlined_call_operand.vmem [shape: f32[2,1,96], index: 5, kind: input, shape index: {}]
  %s6 = inlined_call_operand.vmem [shape: f32[2,32,32], index: 6, kind: input, shape index: {}]
  %s7 = inlined_call_operand.vmem [shape: f32[2,1,32], index: 7, kind: input, shape index: {}]
  %s8 = inlined_call_operand.vmem [shape: f32[2,1,32], index: 8, kind: input, shape index: {}]
  %s9 = inlined_call_operand.vmem [shape: f32[2,1,32], index: 9, kind: input, shape index: {}]
  %s10 = inlined_call_operand.vmem [shape: f32[2,32,64], index: 10, kind: input, shape index: {}]
  %s11 = inlined_call_operand.vmem [shape: f32[2,1,64], index: 11, kind: input, shape index: {}]
  %s12 = inlined_call_operand.vmem [shape: f32[2,64,32], index: 12, kind: input, shape index: {}]
  %s13 = inlined_call_operand.vmem [shape: f32[2,1,32], index: 13, kind: input, shape index: {}]
  %s14 = inlined_call_operand.vmem [shape: f32[2,1,32], index: 14, kind: input, shape index: {}]
  %s15 = inlined_call_operand.vmem [shape: f32[2,1,32], index: 15, kind: input, shape index: {}]
  %s16 = inlined_call_operand.vmem [shape: f32[32,32], index: 16, kind: input, shape index: {}]
  %s17 = inlined_call_operand.vmem [shape: f32[1,32], index: 17, kind: input, shape index: {}]
  %s18 = inlined_call_operand.vmem [shape: f32[32,128], index: 18, kind: input, shape index: {}]
  %s19 = inlined_call_operand.vmem [shape: f32[1,128], index: 19, kind: input, shape index: {}]
  %s20 = inlined_call_operand.hbm [shape: f32[2,128], index: 20, kind: output, shape index: {}]
  %s21 = sld [smem:[#allocation0]]
  $region90: #{bert_classifier_forward.1} parent=0
    _
  %s23 = ssub.s32 1, %s21
  %s24 = scalar_select 0, %s23, %s21
  $region1: #{bert_classifier_forward.1} parent=0
    #allocation2 [shape = 'u8[1024]{0}', space=vmem, size = 0x400, scoped, tag = 'output window, operand 0, single buffered']
    #allocation3 [shape = 's32[1]{0}', space=sflag, size = 0x4, scoped, tag = 'scoped memory for bert_classifier_forward.1']
    %25 = vsyncpa [#allocation3], 0
    // Predicated region
    $region2: #{bert_classifier_forward.1} parent=1 // pred_check
      _
    $region3: #{bert_classifier_forward.1} parent=1 // pred_check_branch
      %27 = sbr.rel (0) target = $region5
    $region4: #{bert_classifier_forward.1} parent=1 // pred_region
      _
    $region5: #{bert_classifier_forward.1} parent=1 // pred_fallthru
      _
    // Predicated region
    $region6: #{bert_classifier_forward.1} parent=1 // pred_check
      _
    $region7: #{bert_classifier_forward.1} parent=1 // pred_check_branch
      %29 = sbr.rel (0) target = $region9
    $region8: #{bert_classifier_forward.1} parent=1 // pred_region
      _
    $region9: #{bert_classifier_forward.1} parent=1 // pred_fallthru
      _
    // Predicated region
    $region10: #{bert_classifier_forward.1} parent=1 // pred_check
      _
    $region11: #{bert_classifier_forward.1} parent=1 // pred_check_branch
      %31 = sbr.rel (0) target = $region13
    $region12: #{bert_classifier_forward.1} parent=1 // pred_region
      _
    $region13: #{bert_classifier_forward.1} parent=1 // pred_fallthru
      _
    // Predicated region
    $region14: #{bert_classifier_forward.1} parent=1 // pred_check
      _
    $region15: #{bert_classifier_forward.1} parent=1 // pred_check_branch
      %33 = sbr.rel (0) target = $region17
    $region16: #{bert_classifier_forward.1} parent=1 // pred_region
      _
    $region17: #{bert_classifier_forward.1} parent=1 // pred_fallthru
      _
    // Predicated region
    $region18: #{bert_classifier_forward.1} parent=1 // pred_check
      _
    $region19: #{bert_classifier_forward.1} parent=1 // pred_check_branch
      %35 = sbr.rel (0) target = $region21
    $region20: #{bert_classifier_forward.1} parent=1 // pred_region
      _
    $region21: #{bert_classifier_forward.1} parent=1 // pred_fallthru
      _
    // Predicated region
    $region22: #{bert_classifier_forward.1} parent=1 // pred_check
      _
    $region23: #{bert_classifier_forward.1} parent=1 // pred_check_branch
      %37 = sbr.rel (0) target = $region25
    $region24: #{bert_classifier_forward.1} parent=1 // pred_region
      _
    $region25: #{bert_classifier_forward.1} parent=1 // pred_fallthru
      _
    // Predicated region
    $region26: #{bert_classifier_forward.1} parent=1 // pred_check
      _
    $region27: #{bert_classifier_forward.1} parent=1 // pred_check_branch
      %39 = sbr.rel (0) target = $region29
    $region28: #{bert_classifier_forward.1} parent=1 // pred_region
      _
    $region29: #{bert_classifier_forward.1} parent=1 // pred_fallthru
      _
    // Predicated region
    $region30: #{bert_classifier_forward.1} parent=1 // pred_check
      _
    $region31: #{bert_classifier_forward.1} parent=1 // pred_check_branch
      %41 = sbr.rel (0) target = $region33
    $region32: #{bert_classifier_forward.1} parent=1 // pred_region
      _
    $region33: #{bert_classifier_forward.1} parent=1 // pred_fallthru
      _
    // Predicated region
    $region34: #{bert_classifier_forward.1} parent=1 // pred_check
      _
    $region35: #{bert_classifier_forward.1} parent=1 // pred_check_branch
      %43 = sbr.rel (0) target = $region37
    $region36: #{bert_classifier_forward.1} parent=1 // pred_region
      _
    $region37: #{bert_classifier_forward.1} parent=1 // pred_fallthru
      _
    // Predicated region
    $region38: #{bert_classifier_forward.1} parent=1 // pred_check
      _
    $region39: #{bert_classifier_forward.1} parent=1 // pred_check_branch
      %45 = sbr.rel (0) target = $region41
    $region40: #{bert_classifier_forward.1} parent=1 // pred_region
      _
    $region41: #{bert_classifier_forward.1} parent=1 // pred_fallthru
      _
    // Predicated region
    $region42: #{bert_classifier_forward.1} parent=1 // pred_check
      _
    $region43: #{bert_classifier_forward.1} parent=1 // pred_check_branch
      %47 = sbr.rel (0) target = $region45
    $region44: #{bert_classifier_forward.1} parent=1 // pred_region
      _
    $region45: #{bert_classifier_forward.1} parent=1 // pred_fallthru
      _
    // Predicated region
    $region46: #{bert_classifier_forward.1} parent=1 // pred_check
      _
    $region47: #{bert_classifier_forward.1} parent=1 // pred_check_branch
      %49 = sbr.rel (0) target = $region49
    $region48: #{bert_classifier_forward.1} parent=1 // pred_region
      _
    $region49: #{bert_classifier_forward.1} parent=1 // pred_fallthru
      _
    // Predicated region
    $region50: #{bert_classifier_forward.1} parent=1 // pred_check
      _
    $region51: #{bert_classifier_forward.1} parent=1 // pred_check_branch
      %51 = sbr.rel (0) target = $region53
    $region52: #{bert_classifier_forward.1} parent=1 // pred_region
      _
    $region53: #{bert_classifier_forward.1} parent=1 // pred_fallthru
      _
    // Predicated region
    $region54: #{bert_classifier_forward.1} parent=1 // pred_check
      _
    $region55: #{bert_classifier_forward.1} parent=1 // pred_check_branch
      %53 = sbr.rel (0) target = $region57
    $region56: #{bert_classifier_forward.1} parent=1 // pred_region
      _
    $region57: #{bert_classifier_forward.1} parent=1 // pred_fallthru
      _
    // Predicated region
    $region58: #{bert_classifier_forward.1} parent=1 // pred_check
      _
    $region59: #{bert_classifier_forward.1} parent=1 // pred_check_branch
      %55 = sbr.rel (0) target = $region61
    $region60: #{bert_classifier_forward.1} parent=1 // pred_region
      _
    $region61: #{bert_classifier_forward.1} parent=1 // pred_fallthru
      _
    // Predicated region
    $region62: #{bert_classifier_forward.1} parent=1 // pred_check
      _
    $region63: #{bert_classifier_forward.1} parent=1 // pred_check_branch
      %57 = sbr.rel (0) target = $region65
    $region64: #{bert_classifier_forward.1} parent=1 // pred_region
      _
    $region65: #{bert_classifier_forward.1} parent=1 // pred_fallthru
      _
    // Predicated region
    $region66: #{bert_classifier_forward.1} parent=1 // pred_check
      _
    $region67: #{bert_classifier_forward.1} parent=1 // pred_check_branch
      %59 = sbr.rel (0) target = $region69
    $region68: #{bert_classifier_forward.1} parent=1 // pred_region
      _
    $region69: #{bert_classifier_forward.1} parent=1 // pred_fallthru
      _
    // Predicated region
    $region70: #{bert_classifier_forward.1} parent=1 // pred_check
      _
    $region71: #{bert_classifier_forward.1} parent=1 // pred_check_branch
      %61 = sbr.rel (0) target = $region73
    $region72: #{bert_classifier_forward.1} parent=1 // pred_region
      _
    $region73: #{bert_classifier_forward.1} parent=1 // pred_fallthru
      _
    // Predicated region
    $region74: #{bert_classifier_forward.1} parent=1 // pred_check
      _
    $region75: #{bert_classifier_forward.1} parent=1 // pred_check_branch
      %63 = sbr.rel (0) target = $region77
    $region76: #{bert_classifier_forward.1} parent=1 // pred_region
      _
    $region77: #{bert_classifier_forward.1} parent=1 // pred_fallthru
      _
    // Predicated region
    $region78: #{bert_classifier_forward.1} parent=1 // pred_check
      _
    $region79: #{bert_classifier_forward.1} parent=1 // pred_check_branch
      %65 = sbr.rel (0) target = $region81
    $region80: #{bert_classifier_forward.1} parent=1 // pred_region
      _
    $region81: #{bert_classifier_forward.1} parent=1 // pred_fallthru
      _
    %v66 = vld [vmem:[%s1] sm:$0xff]
    %v67 = vld [vmem:[%s1 + $0x8] sm:$0xff]
    %v68 = vld [vmem:[%s0] sm:$0xff]
    %v69 = vld [vmem:[%s0 + $0x8] sm:$0xff]
    %v70 = vld [vmem:[%s2] sm:$0x1]
    %v71 = vld [vmem:[%s3] sm:$0x1]
    %vm72 = vcmask 261120
    %v73 = vsel %vm72, %v68, 0.0
    %74 = vadd.xlane.f32.xlu0 %v73
    %v75 = vpop.xlane.xlu0 %74
    %v76 = vsel %vm72, %v69, 0.0
    %77 = vadd.xlane.f32.xlu0 %v76
    %v78 = vpop.xlane.xlu0 %77
    %v79 = vrcp.pop 32.0
    %v80 = vmul.f32 32.0, %v79
    %v81 = vsub.f32 1.0, %v80
    %v82 = vmul.f32 %v79, %v81
    %v83 = vadd.f32 %v79, %v82
    %vm84 = vweird.f32 %v79
    %v85 = vsel %vm84, %v79, %v83
    %v86 = vmul.f32 %v75, %v85
    %v87 = vmul.f32 %v78, %v85
    %v88 = vsub.f32 %v68, %v86
    %v89 = vsub.f32 %v69, %v87
    %v90 = vmul.f32 %v88, %v88
    %v91 = vmul.f32 %v89, %v89
    %v92 = vsel %vm72, %v90, 0.0
    %93 = vadd.xlane.f32.xlu0 %v92
    %v94 = vpop.xlane.xlu0 %93
    %v95 = vsel %vm72, %v91, 0.0
    %96 = vadd.xlane.f32.xlu0 %v95
    %v97 = vpop.xlane.xlu0 %96
    %v98 = vmul.f32 %v94, %v85
    %v99 = vmul.f32 %v97, %v85
    %v100 = vadd.f32 %v98, 1e-12
    %v101 = vadd.f32 %v99, 1e-12
    %v102 = vrsqrt.pop %v100
    %v103 = vmul.f32 %v102, %v100
    %v104 = vmul.f32 %v103, %v102
    %v105 = vmul.f32 0.5, %v104
    %v106 = vsub.f32 1.5, %v105
    %v107 = vmul.f32 %v102, %v106
    %vm108 = vweird.f32 %v100
    %vm109 = vweird.f32 %v102
    %vm110 = vmor %vm108, %vm109
    %v111 = vsel %vm110, %v102, %v107
    %v112 = vrsqrt.pop %v101
    %v113 = vmul.f32 %v112, %v101
    %v114 = vmul.f32 %v113, %v112
    %v115 = vmul.f32 0.5, %v114
    %v116 = vsub.f32 1.5, %v115
    %v117 = vmul.f32 %v112, %v116
    %vm118 = vweird.f32 %v101
    %vm119 = vweird.f32 %v112
    %vm120 = vmor %vm118, %vm119
    %v121 = vsel %vm120, %v112, %v117
    %v122 = vmul.f32 %v88, %v111
    %v123 = vmul.f32 %v89, %v121
    %v125 = vperm.slane %v70, 0
    %v127 = vmul.f32 %v122, %v125
    %v128 = vmul.f32 %v123, %v125
    %v130 = vperm.slane %v71, 0
    %v132 = vadd.f32 %v127, %v130
    %v133 = vadd.f32 %v128, %v130
    %v134 = vld [vmem:[%s4] sm:$0xff]
    %v135 = vld [vmem:[%s4 + $0x8] sm:$0xff]
    %v136 = vld [vmem:[%s4 + $0x10] sm:$0xff]
    %v137 = vld [vmem:[%s4 + $0x18] sm:$0xff]
    %v138 = vld [vmem:[%s5] sm:$0x1]
    %v140 = vperm.slane %v138, 0
    %v143 = vsel %vm72, %v132, 0
    %v146 = vsel %vm72, %v133, 0
    %148 = vmatpush.msra.mxu0 0.0
    %149 = vmatpush.msra.mxu0 0.0
    %150 = vmatpush.msra.mxu0 0.0
    %151 = vmatpush.msra.mxu0 0.0
    %152 = vmatpush.msra.mxu0 0.0
    %153 = vmatpush.msra.mxu0 0.0
    %154 = vmatpush.msra.mxu0 0.0
    %155 = vmatpush.msra.mxu0 0.0
    %156 = vmatpush.msra.mxu0 0.0
    %157 = vmatpush.msra.mxu0 0.0
    %158 = vmatpush.msra.mxu0 0.0
    %159 = vmatpush.msra.mxu0 0.0
    %160 = vmatpush.msra.mxu0 %v137
    %161 = vmatpush.msra.mxu0 %v136
    %162 = vmatpush.msra.mxu0 %v135
    %163 = vmatpush.msra.mxu0 %v134
    %164 = vmatmul.f32.gmra.mxu0 %v143
    %v165 = vpop.f32.mrf.mxu0
    %v166 = vadd.f32 %v140, %v165
    %167 = vmatmul.f32.gmra.mxu0 %v146
    %v168 = vpop.f32.mrf.mxu0
    %v169 = vadd.f32 %v140, %v168
    %170 = vdwg.mxu0
    %173 = vrot.lane.b32.xlu0 %v166, 96
    %v174 = vpop.permute.xlu0 %173
    %175 = vrot.lane.b32.xlu0 %v169, 96
    %v176 = vpop.permute.xlu0 %175
    %vm177 = vcmask 130048
    %v178 = vsel %vm177, %v166, 0
    %v180 = vsel %vm177, %v169, 0
    %v182 = vsel %vm177, %v174, 0
    %v184 = vsel %vm177, %v176, 0
    %186 = vmatpush.xpose.msra.mxu0 0.0
    %187 = vmatpush.xpose.msra.mxu0 0.0
    %188 = vmatpush.xpose.msra.mxu0 0.0
    %189 = vmatpush.xpose.msra.mxu0 0.0
    %190 = vmatpush.xpose.msra.mxu0 0.0
    %191 = vmatpush.xpose.msra.mxu0 0.0
    %192 = vmatpush.xpose.msra.mxu0 0.0
    %193 = vmatpush.xpose.msra.mxu0 0.0
    %194 = vmatpush.xpose.msra.mxu0 0.0
    %195 = vmatpush.xpose.msra.mxu0 0.0
    %196 = vmatpush.xpose.msra.mxu0 0.0
    %197 = vmatpush.xpose.msra.mxu0 0.0
    %198 = vmatpush.xpose.msra.mxu0 0.0
    %199 = vmatpush.xpose.msra.mxu0 0.0
    %200 = vmatpush.xpose.msra.mxu0 %v184
    %201 = vmatpush.xpose.msra.mxu0 %v182
    %202 = vmatmul.f32.gmra.mxu0 %v178
    %v203 = vpop.f32.mrf.mxu0
    %v204 = vadd.f32 0.0, %v203
    %205 = vmatmul.f32.gmra.mxu0 %v180
    %v206 = vpop.f32.mrf.mxu0
    %v207 = vadd.f32 0.0, %v206
    %208 = vdwg.mxu0
    %v209 = vmul.f32 %v204, 0.25
    %v210 = vmul.f32 %v207, 0.25
    %v211 = vadd.f32 %v209, %v66
    %v212 = vadd.f32 %v210, %v67
    %v213 = vsel %vm177, %v211, -inf
    %214 = vmax.xlane.f32.xlu0 %v213
    %v215 = vpop.xlane.xlu0 %214
    %v216 = vsel %vm177, %v212, -inf
    %217 = vmax.xlane.f32.xlu0 %v216
    %v218 = vpop.xlane.xlu0 %217
    %v219 = vsub.f32 %v211, %v215
    %v220 = vsub.f32 %v212, %v218
    %v221 = vmul.f32 %v219, 1.442695
    %v222 = vpow.pop %v221
    %v223 = vmul.f32 %v220, 1.442695
    %v224 = vpow.pop %v223
    %v225 = vsel %vm177, %v222, 0.0
    %226 = vadd.xlane.f32.xlu0 %v225
    %v227 = vpop.xlane.xlu0 %226
    %v228 = vsel %vm177, %v224, 0.0
    %229 = vadd.xlane.f32.xlu0 %v228
    %v230 = vpop.xlane.xlu0 %229
    %v231 = vrcp.pop %v227
    %v232 = vrcp.pop %v230
    %v233 = vmul.f32 %v222, %v231
    %v234 = vmul.f32 %v224, %v232
    %235 = vrot.lane.b32.xlu0 %v166, 64
    %v236 = vpop.permute.xlu0 %235
    %237 = vrot.lane.b32.xlu0 %v169, 64
    %v238 = vpop.permute.xlu0 %237
    %v242 = vsel %vm177, %v233, 0
    %v245 = vsel %vm177, %v234, 0
    %247 = vmatpush.msra.mxu0 0.0
    %248 = vmatpush.msra.mxu0 0.0
    %249 = vmatpush.msra.mxu0 0.0
    %250 = vmatpush.msra.mxu0 0.0
    %251 = vmatpush.msra.mxu0 0.0
    %252 = vmatpush.msra.mxu0 0.0
    %253 = vmatpush.msra.mxu0 0.0
    %254 = vmatpush.msra.mxu0 0.0
    %255 = vmatpush.msra.mxu0 0.0
    %256 = vmatpush.msra.mxu0 0.0
    %257 = vmatpush.msra.mxu0 0.0
    %258 = vmatpush.msra.mxu0 0.0
    %259 = vmatpush.msra.mxu0 0.0
    %260 = vmatpush.msra.mxu0 0.0
    %261 = vmatpush.msra.mxu0 %v238
    %262 = vmatpush.msra.mxu0 %v236
    %263 = vmatmul.f32.gmra.mxu0 %v242
    %v264 = vpop.f32.mrf.mxu0
    %v265 = vadd.f32 0.0, %v264
    %266 = vmatmul.f32.gmra.mxu0 %v245
    %v267 = vpop.f32.mrf.mxu0
    %v268 = vadd.f32 0.0, %v267
    %269 = vdwg.mxu0
    %270 = vrot.lane.b32.xlu0 %v166, 112
    %v271 = vpop.permute.xlu0 %270
    %272 = vrot.lane.b32.xlu0 %v169, 112
    %v273 = vpop.permute.xlu0 %272
    %274 = vrot.lane.b32.xlu0 %v166, 80
    %v275 = vpop.permute.xlu0 %274
    %276 = vrot.lane.b32.xlu0 %v169, 80
    %v277 = vpop.permute.xlu0 %276
    %v278 = vsel %vm177, %v271, 0
    %v280 = vsel %vm177, %v273, 0
    %v282 = vsel %vm177, %v275, 0
    %v284 = vsel %vm177, %v277, 0
    %286 = vmatpush.xpose.msra.mxu0 0.0
    %287 = vmatpush.xpose.msra.mxu0 0.0
    %288 = vmatpush.xpose.msra.mxu0 0.0
    %289 = vmatpush.xpose.msra.mxu0 0.0
    %290 = vmatpush.xpose.msra.mxu0 0.0
    %291 = vmatpush.xpose.msra.mxu0 0.0
    %292 = vmatpush.xpose.msra.mxu0 0.0
    %293 = vmatpush.xpose.msra.mxu0 0.0
    %294 = vmatpush.xpose.msra.mxu0 0.0
    %295 = vmatpush.xpose.msra.mxu0 0.0
    %296 = vmatpush.xpose.msra.mxu0 0.0
    %297 = vmatpush.xpose.msra.mxu0 0.0
    %298 = vmatpush.xpose.msra.mxu0 0.0
    %299 = vmatpush.xpose.msra.mxu0 0.0
    %300 = vmatpush.xpose.msra.mxu0 %v284
    %301 = vmatpush.xpose.msra.mxu0 %v282
    %302 = vmatmul.f32.gmra.mxu0 %v278
    %v303 = vpop.f32.mrf.mxu0
    %v304 = vadd.f32 0.0, %v303
    %305 = vmatmul.f32.gmra.mxu0 %v280
    %v306 = vpop.f32.mrf.mxu0
    %v307 = vadd.f32 0.0, %v306
    %308 = vdwg.mxu0
    %v309 = vmul.f32 %v304, 0.25
    %v310 = vmul.f32 %v307, 0.25
    %v311 = vadd.f32 %v309, %v66
    %v312 = vadd.f32 %v310, %v67
    %v313 = vsel %vm177, %v311, -inf
    %314 = vmax.xlane.f32.xlu0 %v313
    %v315 = vpop.xlane.xlu0 %314
    %v316 = vsel %vm177, %v312, -inf
    %317 = vmax.xlane.f32.xlu0 %v316
    %v318 = vpop.xlane.xlu0 %317
    %v319 = vsub.f32 %v311, %v315
    %v320 = vsub.f32 %v312, %v318
    %v321 = vmul.f32 %v319, 1.442695
    %v322 = vpow.pop %v321
    %v323 = vmul.f32 %v320, 1.442695
    %v324 = vpow.pop %v323
    %v325 = vsel %vm177, %v322, 0.0
    %326 = vadd.xlane.f32.xlu0 %v325
    %v327 = vpop.xlane.xlu0 %326
    %v328 = vsel %vm177, %v324, 0.0
    %329 = vadd.xlane.f32.xlu0 %v328
    %v330 = vpop.xlane.xlu0 %329
    %v331 = vrcp.pop %v327
    %v332 = vrcp.pop %v330
    %v333 = vmul.f32 %v322, %v331
    %v334 = vmul.f32 %v324, %v332
    %335 = vrot.lane.b32.xlu0 %v166, 48
    %v336 = vpop.permute.xlu0 %335
    %337 = vrot.lane.b32.xlu0 %v169, 48
    %v338 = vpop.permute.xlu0 %337
    %v342 = vsel %vm177, %v333, 0
    %v345 = vsel %vm177, %v334, 0
    %347 = vmatpush.msra.mxu0 0.0
    %348 = vmatpush.msra.mxu0 0.0
    %349 = vmatpush.msra.mxu0 0.0
    %350 = vmatpush.msra.mxu0 0.0
    %351 = vmatpush.msra.mxu0 0.0
    %352 = vmatpush.msra.mxu0 0.0
    %353 = vmatpush.msra.mxu0 0.0
    %354 = vmatpush.msra.mxu0 0.0
    %355 = vmatpush.msra.mxu0 0.0
    %356 = vmatpush.msra.mxu0 0.0
    %357 = vmatpush.msra.mxu0 0.0
    %358 = vmatpush.msra.mxu0 0.0
    %359 = vmatpush.msra.mxu0 0.0
    %360 = vmatpush.msra.mxu0 0.0
    %361 = vmatpush.msra.mxu0 %v338
    %362 = vmatpush.msra.mxu0 %v336
    %363 = vmatmul.f32.gmra.mxu0 %v342
    %v364 = vpop.f32.mrf.mxu0
    %v365 = vadd.f32 0.0, %v364
    %366 = vmatmul.f32.gmra.mxu0 %v345
    %v367 = vpop.f32.mrf.mxu0
    %v368 = vadd.f32 0.0, %v367
    %369 = vdwg.mxu0
    %372 = vrot.lane.b32.xlu0 %v365, 16
    %v373 = vpop.permute.xlu0 %372
    %374 = vrot.lane.b32.xlu0 %v368, 16
    %v375 = vpop.permute.xlu0 %374
    %v378 = vsel %vm177, %v265, %v373
    %v379 = vsel %vm177, %v268, %v375
    %v380 = vld [vmem:[%s6] sm:$0xff]
    %v381 = vld [vmem:[%s6 + $0x8] sm:$0xff]
    %v382 = vld [vmem:[%s6 + $0x10] sm:$0xff]
    %v383 = vld [vmem:[%s6 + $0x18] sm:$0xff]
    %v384 = vld [vmem:[%s7] sm:$0x1]
    %v386 = vperm.slane %v384, 0
    %v389 = vsel %vm72, %v378, 0
    %v392 = vsel %vm72, %v379, 0
    %394 = vmatpush.msra.mxu0 0.0
    %395 = vmatpush.msra.mxu0 0.0
    %396 = vmatpush.msra.mxu0 0.0
    %397 = vmatpush.msra.mxu0 0.0
    %398 = vmatpush.msra.mxu0 0.0
    %399 = vmatpush.msra.mxu0 0.0
    %400 = vmatpush.msra.mxu0 0.0
    %401 = vmatpush.msra.mxu0 0.0
    %402 = vmatpush.msra.mxu0 0.0
    %403 = vmatpush.msra.mxu0 0.0
    %404 = vmatpush.msra.mxu0 0.0
    %405 = vmatpush.msra.mxu0 0.0
    %406 = vmatpush.msra.mxu0 %v383
    %407 = vmatpush.msra.mxu0 %v382
    %408 = vmatpush.msra.mxu0 %v381
    %409 = vmatpush.msra.mxu0 %v380
    %410 = vmatmul.f32.gmra.mxu0 %v389
    %v411 = vpop.f32.mrf.mxu0
    %v412 = vadd.f32 %v386, %v411
    %413 = vmatmul.f32.gmra.mxu0 %v392
    %v414 = vpop.f32.mrf.mxu0
    %v415 = vadd.f32 %v386, %v414
    %416 = vdwg.mxu0
    %v417 = vadd.f32 %v132, %v412
    %v418 = vadd.f32 %v133, %v415
    %v419 = vld [vmem:[%s8] sm:$0x1]
    %v420 = vld [vmem:[%s9] sm:$0x1]
    %v421 = vsel %vm72, %v417, 0.0
    %422 = vadd.xlane.f32.xlu0 %v421
    %v423 = vpop.xlane.xlu0 %422
    %v424 = vsel %vm72, %v418, 0.0
    %425 = vadd.xlane.f32.xlu0 %v424
    %v426 = vpop.xlane.xlu0 %425
    %v427 = vmul.f32 %v423, %v85
    %v428 = vmul.f32 %v426, %v85
    %v429 = vsub.f32 %v417, %v427
    %v430 = vsub.f32 %v418, %v428
    %v431 = vmul.f32 %v429, %v429
    %v432 = vmul.f32 %v430, %v430
    %v433 = vsel %vm72, %v431, 0.0
    %434 = vadd.xlane.f32.xlu0 %v433
    %v435 = vpop.xlane.xlu0 %434
    %v436 = vsel %vm72, %v432, 0.0
    %437 = vadd.xlane.f32.xlu0 %v436
    %v438 = vpop.xlane.xlu0 %437
    %v439 = vmul.f32 %v435, %v85
    %v440 = vmul.f32 %v438, %v85
    %v441 = vadd.f32 %v439, 1e-12
    %v442 = vadd.f32 %v440, 1e-12
    %v443 = vrsqrt.pop %v441
    %v444 = vmul.f32 %v443, %v441
    %v445 = vmul.f32 %v444, %v443
    %v446 = vmul.f32 0.5, %v445
    %v447 = vsub.f32 1.5, %v446
    %v448 = vmul.f32 %v443, %v447
    %vm449 = vweird.f32 %v441
    %vm450 = vweird.f32 %v443
    %vm451 = vmor %vm449, %vm450
    %v452 = vsel %vm451, %v443, %v448
    %v453 = vrsqrt.pop %v442
    %v454 = vmul.f32 %v453, %v442
    %v455 = vmul.f32 %v454, %v453
    %v456 = vmul.f32 0.5, %v455
    %v457 = vsub.f32 1.5, %v456
    %v458 = vmul.f32 %v453, %v457
    %vm459 = vweird.f32 %v442
    %vm460 = vweird.f32 %v453
    %vm461 = vmor %vm459, %vm460
    %v462 = vsel %vm461, %v453, %v458
    %v463 = vmul.f32 %v429, %v452
    %v464 = vmul.f32 %v430, %v462
    %v466 = vperm.slane %v419, 0
    %v468 = vmul.f32 %v463, %v466
    %v469 = vmul.f32 %v464, %v466
    %v471 = vperm.slane %v420, 0
    %v473 = vadd.f32 %v468, %v471
    %v474 = vadd.f32 %v469, %v471
    %v475 = vld [vmem:[%s10] sm:$0xff]
    %v476 = vld [vmem:[%s10 + $0x8] sm:$0xff]
    %v477 = vld [vmem:[%s10 + $0x10] sm:$0xff]
    %v478 = vld [vmem:[%s10 + $0x18] sm:$0xff]
    %v479 = vld [vmem:[%s11] sm:$0x1]
    %v481 = vperm.slane %v479, 0
    %v484 = vsel %vm72, %v473, 0
    %v487 = vsel %vm72, %v474, 0
    %489 = vmatpush.msra.mxu0 0.0
    %490 = vmatpush.msra.mxu0 0.0
    %491 = vmatpush.msra.mxu0 0.0
    %492 = vmatpush.msra.mxu0 0.0
    %493 = vmatpush.msra.mxu0 0.0
    %494 = vmatpush.msra.mxu0 0.0
    %495 = vmatpush.msra.mxu0 0.0
    %496 = vmatpush.msra.mxu0 0.0
    %497 = vmatpush.msra.mxu0 0.0
    %498 = vmatpush.msra.mxu0 0.0
    %499 = vmatpush.msra.mxu0 0.0
    %500 = vmatpush.msra.mxu0 0.0
    %501 = vmatpush.msra.mxu0 %v478
    %502 = vmatpush.msra.mxu0 %v477
    %503 = vmatpush.msra.mxu0 %v476
    %504 = vmatpush.msra.mxu0 %v475
    %505 = vmatmul.f32.gmra.mxu0 %v484
    %v506 = vpop.f32.mrf.mxu0
    %v507 = vadd.f32 %v481, %v506
    %508 = vmatmul.f32.gmra.mxu0 %v487
    %v509 = vpop.f32.mrf.mxu0
    %v510 = vadd.f32 %v481, %v509
    %511 = vdwg.mxu0
    %v512 = vmul.f32 %v507, 0.5
    %v513 = vmul.f32 %v510, 0.5
    %v514 = vmul.f32 %v507, 0.044715
    %v515 = vmul.f32 %v510, 0.044715
    %v516 = vmul.f32 %v514, %v507
    %v517 = vmul.f32 %v515, %v510
    %v518 = vmul.f32 %v516, %v507
    %v519 = vmul.f32 %v517, %v510
    %v520 = vadd.f32 %v507, %v518
    %v521 = vadd.f32 %v510, %v519
    %v522 = vmul.f32 %v520, 0.7978846
    %v523 = vmul.f32 %v521, 0.7978846
    %v524 = vtanh.pop %v522
    %v525 = vtanh.pop %v523
    %v526 = vadd.f32 %v524, 1.0
    %v527 = vadd.f32 %v525, 1.0
    %v528 = vmul.f32 %v512, %v526
    %v529 = vmul.f32 %v513, %v527
    %v530 = vld [vmem:[%s12] sm:$0xff]
    %v531 = vld [vmem:[%s12 + $0x8] sm:$0xff]
    %v532 = vld [vmem:[%s12 + $0x10] sm:$0xff]
    %v533 = vld [vmem:[%s12 + $0x18] sm:$0xff]
    %v534 = vld [vmem:[%s12 + $0x20] sm:$0xff]
    %v535 = vld [vmem:[%s12 + $0x28] sm:$0xff]
    %v536 = vld [vmem:[%s12 + $0x30] sm:$0xff]
    %v537 = vld [vmem:[%s12 + $0x38] sm:$0xff]
    %v538 = vld [vmem:[%s13] sm:$0x1]
    %v540 = vperm.slane %v538, 0
    %vm542 = vcmask 523264
    %v544 = vsel %vm542, %v528, 0
    %v547 = vsel %vm542, %v529, 0
    %549 = vmatpush.msra.mxu0 0.0
    %550 = vmatpush.msra.mxu0 0.0
    %551 = vmatpush.msra.mxu0 0.0
    %552 = vmatpush.msra.mxu0 0.0
    %553 = vmatpush.msra.mxu0 0.0
    %554 = vmatpush.msra.mxu0 0.0
    %555 = vmatpush.msra.mxu0 0.0
    %556 = vmatpush.msra.mxu0 0.0
    %557 = vmatpush.msra.mxu0 %v537
    %558 = vmatpush.msra.mxu0 %v536
    %559 = vmatpush.msra.mxu0 %v535
    %560 = vmatpush.msra.mxu0 %v534
    %561 = vmatpush.msra.mxu0 %v533
    %562 = vmatpush.msra.mxu0 %v532
    %563 = vmatpush.msra.mxu0 %v531
    %564 = vmatpush.msra.mxu0 %v530
    %565 = vmatmul.f32.gmra.mxu0 %v544
    %v566 = vpop.f32.mrf.mxu0
    %v567 = vadd.f32 %v540, %v566
    %568 = vmatmul.f32.gmra.mxu0 %v547
    %v569 = vpop.f32.mrf.mxu0
    %v570 = vadd.f32 %v540, %v569
    %571 = vdwg.mxu0
    %v572 = vadd.f32 %v473, %v567
    %v573 = vadd.f32 %v474, %v570
    %v574 = vld [vmem:[%s14] sm:$0x1]
    %v575 = vld [vmem:[%s15] sm:$0x1]
    %v576 = vsel %vm72, %v572, 0.0
    %577 = vadd.xlane.f32.xlu0 %v576
    %v578 = vpop.xlane.xlu0 %577
    %v579 = vsel %vm72, %v573, 0.0
    %580 = vadd.xlane.f32.xlu0 %v579
    %v581 = vpop.xlane.xlu0 %580
    %v582 = vmul.f32 %v578, %v85
    %v583 = vmul.f32 %v581, %v85
    %v584 = vsub.f32 %v572, %v582
    %v585 = vsub.f32 %v573, %v583
    %v586 = vmul.f32 %v584, %v584
    %v587 = vmul.f32 %v585, %v585
    %v588 = vsel %vm72, %v586, 0.0
    %589 = vadd.xlane.f32.xlu0 %v588
    %v590 = vpop.xlane.xlu0 %589
    %v591 = vsel %vm72, %v587, 0.0
    %592 = vadd.xlane.f32.xlu0 %v591
    %v593 = vpop.xlane.xlu0 %592
    %v594 = vmul.f32 %v590, %v85
    %v595 = vmul.f32 %v593, %v85
    %v596 = vadd.f32 %v594, 1e-12
    %v597 = vadd.f32 %v595, 1e-12
    %v598 = vrsqrt.pop %v596
    %v599 = vmul.f32 %v598, %v596
    %v600 = vmul.f32 %v599, %v598
    %v601 = vmul.f32 0.5, %v600
    %v602 = vsub.f32 1.5, %v601
    %v603 = vmul.f32 %v598, %v602
    %vm604 = vweird.f32 %v596
    %vm605 = vweird.f32 %v598
    %vm606 = vmor %vm604, %vm605
    %v607 = vsel %vm606, %v598, %v603
    %v608 = vrsqrt.pop %v597
    %v609 = vmul.f32 %v608, %v597
    %v610 = vmul.f32 %v609, %v608
    %v611 = vmul.f32 0.5, %v610
    %v612 = vsub.f32 1.5, %v611
    %v613 = vmul.f32 %v608, %v612
    %vm614 = vweird.f32 %v597
    %vm615 = vweird.f32 %v608
    %vm616 = vmor %vm614, %vm615
    %v617 = vsel %vm616, %v608, %v613
    %v618 = vmul.f32 %v584, %v607
    %v619 = vmul.f32 %v585, %v617
    %v621 = vperm.slane %v574, 0
    %v623 = vmul.f32 %v618, %v621
    %v624 = vmul.f32 %v619, %v621
    %v626 = vperm.slane %v575, 0
    %v628 = vadd.f32 %v623, %v626
    %v629 = vadd.f32 %v624, %v626
    %s630 = scalar_lea.vmem %s4, 32
    %v631 = vld [vmem:[%s630] sm:$0xff]
    %v632 = vld [vmem:[%s630 + $0x8] sm:$0xff]
    %v633 = vld [vmem:[%s630 + $0x10] sm:$0xff]
    %v634 = vld [vmem:[%s630 + $0x18] sm:$0xff]
    %s635 = scalar_lea.vmem %s5, 1
    %v636 = vld [vmem:[%s635] sm:$0x1]
    %v638 = vperm.slane %v636, 0
    %v641 = vsel %vm72, %v628, 0
    %v644 = vsel %vm72, %v629, 0
    %646 = vmatpush.msra.mxu0 0.0
    %647 = vmatpush.msra.mxu0 0.0
    %648 = vmatpush.msra.mxu0 0.0
    %649 = vmatpush.msra.mxu0 0.0
    %650 = vmatpush.msra.mxu0 0.0
    %651 = vmatpush.msra.mxu0 0.0
    %652 = vmatpush.msra.mxu0 0.0
    %653 = vmatpush.msra.mxu0 0.0
    %654 = vmatpush.msra.mxu0 0.0
    %655 = vmatpush.msra.mxu0 0.0
    %656 = vmatpush.msra.mxu0 0.0
    %657 = vmatpush.msra.mxu0 0.0
    %658 = vmatpush.msra.mxu0 %v634
    %659 = vmatpush.msra.mxu0 %v633
    %660 = vmatpush.msra.mxu0 %v632
    %661 = vmatpush.msra.mxu0 %v631
    %662 = vmatmul.f32.gmra.mxu0 %v641
    %v663 = vpop.f32.mrf.mxu0
    %v664 = vadd.f32 %v638, %v663
    %665 = vmatmul.f32.gmra.mxu0 %v644
    %v666 = vpop.f32.mrf.mxu0
    %v667 = vadd.f32 %v638, %v666
    %668 = vdwg.mxu0
    %671 = vrot.lane.b32.xlu0 %v664, 96
    %v672 = vpop.permute.xlu0 %671
    %673 = vrot.lane.b32.xlu0 %v667, 96
    %v674 = vpop.permute.xlu0 %673
    %v675 = vsel %vm177, %v664, 0
    %v677 = vsel %vm177, %v667, 0
    %v679 = vsel %vm177, %v672, 0
    %v681 = vsel %vm177, %v674, 0
    %683 = vmatpush.xpose.msra.mxu0 0.0
    %684 = vmatpush.xpose.msra.mxu0 0.0
    %685 = vmatpush.xpose.msra.mxu0 0.0
    %686 = vmatpush.xpose.msra.mxu0 0.0
    %687 = vmatpush.xpose.msra.mxu0 0.0
    %688 = vmatpush.xpose.msra.mxu0 0.0
    %689 = vmatpush.xpose.msra.mxu0 0.0
    %690 = vmatpush.xpose.msra.mxu0 0.0
    %691 = vmatpush.xpose.msra.mxu0 0.0
    %692 = vmatpush.xpose.msra.mxu0 0.0
    %693 = vmatpush.xpose.msra.mxu0 0.0
    %694 = vmatpush.xpose.msra.mxu0 0.0
    %695 = vmatpush.xpose.msra.mxu0 0.0
    %696 = vmatpush.xpose.msra.mxu0 0.0
    %697 = vmatpush.xpose.msra.mxu0 %v681
    %698 = vmatpush.xpose.msra.mxu0 %v679
    %699 = vmatmul.f32.gmra.mxu0 %v675
    %v700 = vpop.f32.mrf.mxu0
    %v701 = vadd.f32 0.0, %v700
    %702 = vmatmul.f32.gmra.mxu0 %v677
    %v703 = vpop.f32.mrf.mxu0
    %v704 = vadd.f32 0.0, %v703
    %705 = vdwg.mxu0
    %v706 = vmul.f32 %v701, 0.25
    %v707 = vmul.f32 %v704, 0.25
    %v708 = vadd.f32 %v706, %v66
    %v709 = vadd.f32 %v707, %v67
    %v710 = vsel %vm177, %v708, -inf
    %711 = vmax.xlane.f32.xlu0 %v710
    %v712 = vpop.xlane.xlu0 %711
    %v713 = vsel %vm177, %v709, -inf
    %714 = vmax.xlane.f32.xlu0 %v713
    %v715 = vpop.xlane.xlu0 %714
    %v716 = vsub.f32 %v708, %v712
    %v717 = vsub.f32 %v709, %v715
    %v718 = vmul.f32 %v716, 1.442695
    %v719 = vpow.pop %v718
    %v720 = vmul.f32 %v717, 1.442695
    %v721 = vpow.pop %v720
    %v722 = vsel %vm177, %v719, 0.0
    %723 = vadd.xlane.f32.xlu0 %v722
    %v724 = vpop.xlane.xlu0 %723
    %v725 = vsel %vm177, %v721, 0.0
    %726 = vadd.xlane.f32.xlu0 %v725
    %v727 = vpop.xlane.xlu0 %726
    %v728 = vrcp.pop %v724
    %v729 = vrcp.pop %v727
    %v730 = vmul.f32 %v719, %v728
    %v731 = vmul.f32 %v721, %v729
    %732 = vrot.lane.b32.xlu0 %v664, 64
    %v733 = vpop.permute.xlu0 %732
    %734 = vrot.lane.b32.xlu0 %v667, 64
    %v735 = vpop.permute.xlu0 %734
    %v739 = vsel %vm177, %v730, 0
    %v742 = vsel %vm177, %v731, 0
    %744 = vmatpush.msra.mxu0 0.0
    %745 = vmatpush.msra.mxu0 0.0
    %746 = vmatpush.msra.mxu0 0.0
    %747 = vmatpush.msra.mxu0 0.0
    %748 = vmatpush.msra.mxu0 0.0
    %749 = vmatpush.msra.mxu0 0.0
    %750 = vmatpush.msra.mxu0 0.0
    %751 = vmatpush.msra.mxu0 0.0
    %752 = vmatpush.msra.mxu0 0.0
    %753 = vmatpush.msra.mxu0 0.0
    %754 = vmatpush.msra.mxu0 0.0
    %755 = vmatpush.msra.mxu0 0.0
    %756 = vmatpush.msra.mxu0 0.0
    %757 = vmatpush.msra.mxu0 0.0
    %758 = vmatpush.msra.mxu0 %v735
    %759 = vmatpush.msra.mxu0 %v733
    %760 = vmatmul.f32.gmra.mxu0 %v739
    %v761 = vpop.f32.mrf.mxu0
    %v762 = vadd.f32 0.0, %v761
    %763 = vmatmul.f32.gmra.mxu0 %v742
    %v764 = vpop.f32.mrf.mxu0
    %v765 = vadd.f32 0.0, %v764
    %766 = vdwg.mxu0
    %767 = vrot.lane.b32.xlu0 %v664, 112
    %v768 = vpop.permute.xlu0 %767
    %769 = vrot.lane.b32.xlu0 %v667, 112
    %v770 = vpop.permute.xlu0 %769
    %771 = vrot.lane.b32.xlu0 %v664, 80
    %v772 = vpop.permute.xlu0 %771
    %773 = vrot.lane.b32.xlu0 %v667, 80
    %v774 = vpop.permute.xlu0 %773
    %v775 = vsel %vm177, %v768, 0
    %v777 = vsel %vm177, %v770, 0
    %v779 = vsel %vm177, %v772, 0
    %v781 = vsel %vm177, %v774, 0
    %783 = vmatpush.xpose.msra.mxu0 0.0
    %784 = vmatpush.xpose.msra.mxu0 0.0
    %785 = vmatpush.xpose.msra.mxu0 0.0
    %786 = vmatpush.xpose.msra.mxu0 0.0
    %787 = vmatpush.xpose.msra.mxu0 0.0
    %788 = vmatpush.xpose.msra.mxu0 0.0
    %789 = vmatpush.xpose.msra.mxu0 0.0
    %790 = vmatpush.xpose.msra.mxu0 0.0
    %791 = vmatpush.xpose.msra.mxu0 0.0
    %792 = vmatpush.xpose.msra.mxu0 0.0
    %793 = vmatpush.xpose.msra.mxu0 0.0
    %794 = vmatpush.xpose.msra.mxu0 0.0
    %795 = vmatpush.xpose.msra.mxu0 0.0
    %796 = vmatpush.xpose.msra.mxu0 0.0
    %797 = vmatpush.xpose.msra.mxu0 %v781
    %798 = vmatpush.xpose.msra.mxu0 %v779
    %799 = vmatmul.f32.gmra.mxu0 %v775
    %v800 = vpop.f32.mrf.mxu0
    %v801 = vadd.f32 0.0, %v800
    %802 = vmatmul.f32.gmra.mxu0 %v777
    %v803 = vpop.f32.mrf.mxu0
    %v804 = vadd.f32 0.0, %v803
    %805 = vdwg.mxu0
    %v806 = vmul.f32 %v801, 0.25
    %v807 = vmul.f32 %v804, 0.25
    %v808 = vadd.f32 %v806, %v66
    %v809 = vadd.f32 %v807, %v67
    %v810 = vsel %vm177, %v808, -inf
    %811 = vmax.xlane.f32.xlu0 %v810
    %v812 = vpop.xlane.xlu0 %811
    %v813 = vsel %vm177, %v809, -inf
    %814 = vmax.xlane.f32.xlu0 %v813
    %v815 = vpop.xlane.xlu0 %814
    %v816 = vsub.f32 %v808, %v812
    %v817 = vsub.f32 %v809, %v815
    %v818 = vmul.f32 %v816, 1.442695
    %v819 = vpow.pop %v818
    %v820 = vmul.f32 %v817, 1.442695
    %v821 = vpow.pop %v820
    %v822 = vsel %vm177, %v819, 0.0
    %823 = vadd.xlane.f32.xlu0 %v822
    %v824 = vpop.xlane.xlu0 %823
    %v825 = vsel %vm177, %v821, 0.0
    %826 = vadd.xlane.f32.xlu0 %v825
    %v827 = vpop.xlane.xlu0 %826
    %v828 = vrcp.pop %v824
    %v829 = vrcp.pop %v827
    %v830 = vmul.f32 %v819, %v828
    %v831 = vmul.f32 %v821, %v829
    %832 = vrot.lane.b32.xlu0 %v664, 48
    %v833 = vpop.permute.xlu0 %832
    %834 = vrot.lane.b32.xlu0 %v667, 48
    %v835 = vpop.permute.xlu0 %834
    %v839 = vsel %vm177, %v830, 0
    %v842 = vsel %vm177, %v831, 0
    %844 = vmatpush.msra.mxu0 0.0
    %845 = vmatpush.msra.mxu0 0.0
    %846 = vmatpush.msra.mxu0 0.0
    %847 = vmatpush.msra.mxu0 0.0
    %848 = vmatpush.msra.mxu0 0.0
    %849 = vmatpush.msra.mxu0 0.0
    %850 = vmatpush.msra.mxu0 0.0
    %851 = vmatpush.msra.mxu0 0.0
    %852 = vmatpush.msra.mxu0 0.0
    %853 = vmatpush.msra.mxu0 0.0
    %854 = vmatpush.msra.mxu0 0.0
    %855 = vmatpush.msra.mxu0 0.0
    %856 = vmatpush.msra.mxu0 0.0
    %857 = vmatpush.msra.mxu0 0.0
    %858 = vmatpush.msra.mxu0 %v835
    %859 = vmatpush.msra.mxu0 %v833
    %860 = vmatmul.f32.gmra.mxu0 %v839
    %v861 = vpop.f32.mrf.mxu0
    %v862 = vadd.f32 0.0, %v861
    %863 = vmatmul.f32.gmra.mxu0 %v842
    %v864 = vpop.f32.mrf.mxu0
    %v865 = vadd.f32 0.0, %v864
    %866 = vdwg.mxu0
    %869 = vrot.lane.b32.xlu0 %v862, 16
    %v870 = vpop.permute.xlu0 %869
    %871 = vrot.lane.b32.xlu0 %v865, 16
    %v872 = vpop.permute.xlu0 %871
    %v875 = vsel %vm177, %v762, %v870
    %v876 = vsel %vm177, %v765, %v872
    %s877 = scalar_lea.vmem %s6, 32
    %v878 = vld [vmem:[%s877] sm:$0xff]
    %v879 = vld [vmem:[%s877 + $0x8] sm:$0xff]
    %v880 = vld [vmem:[%s877 + $0x10] sm:$0xff]
    %v881 = vld [vmem:[%s877 + $0x18] sm:$0xff]
    %s882 = scalar_lea.vmem %s7, 1
    %v883 = vld [vmem:[%s882] sm:$0x1]
    %v885 = vperm.slane %v883, 0
    %v888 = vsel %vm72, %v875, 0
    %v891 = vsel %vm72, %v876, 0
    %893 = vmatpush.msra.mxu0 0.0
    %894 = vmatpush.msra.mxu0 0.0
    %895 = vmatpush.msra.mxu0 0.0
    %896 = vmatpush.msra.mxu0 0.0
    %897 = vmatpush.msra.mxu0 0.0
    %898 = vmatpush.msra.mxu0 0.0
    %899 = vmatpush.msra.mxu0 0.0
    %900 = vmatpush.msra.mxu0 0.0
    %901 = vmatpush.msra.mxu0 0.0
    %902 = vmatpush.msra.mxu0 0.0
    %903 = vmatpush.msra.mxu0 0.0
    %904 = vmatpush.msra.mxu0 0.0
    %905 = vmatpush.msra.mxu0 %v881
    %906 = vmatpush.msra.mxu0 %v880
    %907 = vmatpush.msra.mxu0 %v879
    %908 = vmatpush.msra.mxu0 %v878
    %909 = vmatmul.f32.gmra.mxu0 %v888
    %v910 = vpop.f32.mrf.mxu0
    %v911 = vadd.f32 %v885, %v910
    %912 = vmatmul.f32.gmra.mxu0 %v891
    %v913 = vpop.f32.mrf.mxu0
    %v914 = vadd.f32 %v885, %v913
    %915 = vdwg.mxu0
    %v916 = vadd.f32 %v628, %v911
    %v917 = vadd.f32 %v629, %v914
    %s918 = scalar_lea.vmem %s8, 1
    %v919 = vld [vmem:[%s918] sm:$0x1]
    %s920 = scalar_lea.vmem %s9, 1
    %v921 = vld [vmem:[%s920] sm:$0x1]
    %v922 = vsel %vm72, %v916, 0.0
    %923 = vadd.xlane.f32.xlu0 %v922
    %v924 = vpop.xlane.xlu0 %923
    %v925 = vsel %vm72, %v917, 0.0
    %926 = vadd.xlane.f32.xlu0 %v925
    %v927 = vpop.xlane.xlu0 %926
    %v928 = vmul.f32 %v924, %v85
    %v929 = vmul.f32 %v927, %v85
    %v930 = vsub.f32 %v916, %v928
    %v931 = vsub.f32 %v917, %v929
    %v932 = vmul.f32 %v930, %v930
    %v933 = vmul.f32 %v931, %v931
    %v934 = vsel %vm72, %v932, 0.0
    %935 = vadd.xlane.f32.xlu0 %v934
    %v936 = vpop.xlane.xlu0 %935
    %v937 = vsel %vm72, %v933, 0.0
    %938 = vadd.xlane.f32.xlu0 %v937
    %v939 = vpop.xlane.xlu0 %938
    %v940 = vmul.f32 %v936, %v85
    %v941 = vmul.f32 %v939, %v85
    %v942 = vadd.f32 %v940, 1e-12
    %v943 = vadd.f32 %v941, 1e-12
    %v944 = vrsqrt.pop %v942
    %v945 = vmul.f32 %v944, %v942
    %v946 = vmul.f32 %v945, %v944
    %v947 = vmul.f32 0.5, %v946
    %v948 = vsub.f32 1.5, %v947
    %v949 = vmul.f32 %v944, %v948
    %vm950 = vweird.f32 %v942
    %vm951 = vweird.f32 %v944
    %vm952 = vmor %vm950, %vm951
    %v953 = vsel %vm952, %v944, %v949
    %v954 = vrsqrt.pop %v943
    %v955 = vmul.f32 %v954, %v943
    %v956 = vmul.f32 %v955, %v954
    %v957 = vmul.f32 0.5, %v956
    %v958 = vsub.f32 1.5, %v957
    %v959 = vmul.f32 %v954, %v958
    %vm960 = vweird.f32 %v943
    %vm961 = vweird.f32 %v954
    %vm962 = vmor %vm960, %vm961
    %v963 = vsel %vm962, %v954, %v959
    %v964 = vmul.f32 %v930, %v953
    %v965 = vmul.f32 %v931, %v963
    %v967 = vperm.slane %v919, 0
    %v969 = vmul.f32 %v964, %v967
    %v970 = vmul.f32 %v965, %v967
    %v972 = vperm.slane %v921, 0
    %v974 = vadd.f32 %v969, %v972
    %v975 = vadd.f32 %v970, %v972
    %s976 = scalar_lea.vmem %s10, 32
    %v977 = vld [vmem:[%s976] sm:$0xff]
    %v978 = vld [vmem:[%s976 + $0x8] sm:$0xff]
    %v979 = vld [vmem:[%s976 + $0x10] sm:$0xff]
    %v980 = vld [vmem:[%s976 + $0x18] sm:$0xff]
    %s981 = scalar_lea.vmem %s11, 1
    %v982 = vld [vmem:[%s981] sm:$0x1]
    %v984 = vperm.slane %v982, 0
    %v987 = vsel %vm72, %v974, 0
    %v990 = vsel %vm72, %v975, 0
    %992 = vmatpush.msra.mxu0 0.0
    %993 = vmatpush.msra.mxu0 0.0
    %994 = vmatpush.msra.mxu0 0.0
    %995 = vmatpush.msra.mxu0 0.0
    %996 = vmatpush.msra.mxu0 0.0
    %997 = vmatpush.msra.mxu0 0.0
    %998 = vmatpush.msra.mxu0 0.0
    %999 = vmatpush.msra.mxu0 0.0
    %1000 = vmatpush.msra.mxu0 0.0
    %1001 = vmatpush.msra.mxu0 0.0
    %1002 = vmatpush.msra.mxu0 0.0
    %1003 = vmatpush.msra.mxu0 0.0
    %1004 = vmatpush.msra.mxu0 %v980
    %1005 = vmatpush.msra.mxu0 %v979
    %1006 = vmatpush.msra.mxu0 %v978
    %1007 = vmatpush.msra.mxu0 %v977
    %1008 = vmatmul.f32.gmra.mxu0 %v987
    %v1009 = vpop.f32.mrf.mxu0
    %v1010 = vadd.f32 %v984, %v1009
    %1011 = vmatmul.f32.gmra.mxu0 %v990
    %v1012 = vpop.f32.mrf.mxu0
    %v1013 = vadd.f32 %v984, %v1012
    %1014 = vdwg.mxu0
    %v1015 = vmul.f32 %v1010, 0.5
    %v1016 = vmul.f32 %v1013, 0.5
    %v1017 = vmul.f32 %v1010, 0.044715
    %v1018 = vmul.f32 %v1013, 0.044715
    %v1019 = vmul.f32 %v1017, %v1010
    %v1020 = vmul.f32 %v1018, %v1013
    %v1021 = vmul.f32 %v1019, %v1010
    %v1022 = vmul.f32 %v1020, %v1013
    %v1023 = vadd.f32 %v1010, %v1021
    %v1024 = vadd.f32 %v1013, %v1022
    %v1025 = vmul.f32 %v1023, 0.7978846
    %v1026 = vmul.f32 %v1024, 0.7978846
    %v1027 = vtanh.pop %v1025
    %v1028 = vtanh.pop %v1026
    %v1029 = vadd.f32 %v1027, 1.0
    %v1030 = vadd.f32 %v1028, 1.0
    %v1031 = vmul.f32 %v1015, %v1029
    %v1032 = vmul.f32 %v1016, %v1030
    %s1033 = scalar_lea.vmem %s12, 64
    %v1034 = vld [vmem:[%s1033] sm:$0xff]
    %v1035 = vld [vmem:[%s1033 + $0x8] sm:$0xff]
    %v1036 = vld [vmem:[%s1033 + $0x10] sm:$0xff]
    %v1037 = vld [vmem:[%s1033 + $0x18] sm:$0xff]
    %v1038 = vld [vmem:[%s1033 + $0x20] sm:$0xff]
    %v1039 = vld [vmem:[%s1033 + $0x28] sm:$0xff]
    %v1040 = vld [vmem:[%s1033 + $0x30] sm:$0xff]
    %v1041 = vld [vmem:[%s1033 + $0x38] sm:$0xff]
    %s1042 = scalar_lea.vmem %s13, 1
    %v1043 = vld [vmem:[%s1042] sm:$0x1]
    %v1045 = vperm.slane %v1043, 0
    %v1048 = vsel %vm542, %v1031, 0
    %v1051 = vsel %vm542, %v1032, 0
    %1053 = vmatpush.msra.mxu0 0.0
    %1054 = vmatpush.msra.mxu0 0.0
    %1055 = vmatpush.msra.mxu0 0.0
    %1056 = vmatpush.msra.mxu0 0.0
    %1057 = vmatpush.msra.mxu0 0.0
    %1058 = vmatpush.msra.mxu0 0.0
    %1059 = vmatpush.msra.mxu0 0.0
    %1060 = vmatpush.msra.mxu0 0.0
    %1061 = vmatpush.msra.mxu0 %v1041
    %1062 = vmatpush.msra.mxu0 %v1040
    %1063 = vmatpush.msra.mxu0 %v1039
    %1064 = vmatpush.msra.mxu0 %v1038
    %1065 = vmatpush.msra.mxu0 %v1037
    %1066 = vmatpush.msra.mxu0 %v1036
    %1067 = vmatpush.msra.mxu0 %v1035
    %1068 = vmatpush.msra.mxu0 %v1034
    %1069 = vmatmul.f32.gmra.mxu0 %v1048
    %v1070 = vpop.f32.mrf.mxu0
    %v1071 = vadd.f32 %v1045, %v1070
    %1072 = vmatmul.f32.gmra.mxu0 %v1051
    %v1073 = vpop.f32.mrf.mxu0
    %v1074 = vadd.f32 %v1045, %v1073
    %1075 = vdwg.mxu0
    %v1076 = vadd.f32 %v974, %v1071
    %v1077 = vadd.f32 %v975, %v1074
    %s1078 = scalar_lea.vmem %s14, 1
    %v1079 = vld [vmem:[%s1078] sm:$0x1]
    %s1080 = scalar_lea.vmem %s15, 1
    %v1081 = vld [vmem:[%s1080] sm:$0x1]
    %v1082 = vsel %vm72, %v1076, 0.0
    %1083 = vadd.xlane.f32.xlu0 %v1082
    %v1084 = vpop.xlane.xlu0 %1083
    %v1085 = vsel %vm72, %v1077, 0.0
    %1086 = vadd.xlane.f32.xlu0 %v1085
    %v1087 = vpop.xlane.xlu0 %1086
    %v1088 = vmul.f32 %v1084, %v85
    %v1089 = vmul.f32 %v1087, %v85
    %v1090 = vsub.f32 %v1076, %v1088
    %v1091 = vsub.f32 %v1077, %v1089
    %v1092 = vmul.f32 %v1090, %v1090
    %v1093 = vmul.f32 %v1091, %v1091
    %v1094 = vsel %vm72, %v1092, 0.0
    %1095 = vadd.xlane.f32.xlu0 %v1094
    %v1096 = vpop.xlane.xlu0 %1095
    %v1097 = vsel %vm72, %v1093, 0.0
    %1098 = vadd.xlane.f32.xlu0 %v1097
    %v1099 = vpop.xlane.xlu0 %1098
    %v1100 = vmul.f32 %v1096, %v85
    %v1101 = vmul.f32 %v1099, %v85
    %v1102 = vadd.f32 %v1100, 1e-12
    %v1103 = vadd.f32 %v1101, 1e-12
    %v1104 = vrsqrt.pop %v1102
    %v1105 = vmul.f32 %v1104, %v1102
    %v1106 = vmul.f32 %v1105, %v1104
    %v1107 = vmul.f32 0.5, %v1106
    %v1108 = vsub.f32 1.5, %v1107
    %v1109 = vmul.f32 %v1104, %v1108
    %vm1110 = vweird.f32 %v1102
    %vm1111 = vweird.f32 %v1104
    %vm1112 = vmor %vm1110, %vm1111
    %v1113 = vsel %vm1112, %v1104, %v1109
    %v1114 = vrsqrt.pop %v1103
    %v1115 = vmul.f32 %v1114, %v1103
    %v1116 = vmul.f32 %v1115, %v1114
    %v1117 = vmul.f32 0.5, %v1116
    %v1118 = vsub.f32 1.5, %v1117
    %v1119 = vmul.f32 %v1114, %v1118
    %vm1120 = vweird.f32 %v1103
    %vm1121 = vweird.f32 %v1114
    %vm1122 = vmor %vm1120, %vm1121
    %v1123 = vsel %vm1122, %v1114, %v1119
    %v1124 = vmul.f32 %v1090, %v1113
    %v1125 = vmul.f32 %v1091, %v1123
    %v1127 = vperm.slane %v1079, 0
    %v1129 = vmul.f32 %v1124, %v1127
    %v1130 = vmul.f32 %v1125, %v1127
    %v1132 = vperm.slane %v1081, 0
    %v1134 = vadd.f32 %v1129, %v1132
    %v1135 = vadd.f32 %v1130, %v1132
    %v1137 = vrot.slane %v1135, 7
    %vm1139 = vcmask 1040384
    %v1140 = vsel %vm1139, %v1134, %v1137
    %v1141 = vld [vmem:[%s16] sm:$0xff]
    %v1142 = vld [vmem:[%s16 + $0x8] sm:$0xff]
    %v1143 = vld [vmem:[%s16 + $0x10] sm:$0xff]
    %v1144 = vld [vmem:[%s16 + $0x18] sm:$0xff]
    %v1145 = vld [vmem:[%s17] sm:$0x1]
    %v1147 = vperm.slane %v1145, 0
    %v1150 = vsel %vm72, %v1140, 0
    %1152 = vmatpush.msra.mxu0 0.0
    %1153 = vmatpush.msra.mxu0 0.0
    %1154 = vmatpush.msra.mxu0 0.0
    %1155 = vmatpush.msra.mxu0 0.0
    %1156 = vmatpush.msra.mxu0 0.0
    %1157 = vmatpush.msra.mxu0 0.0
    %1158 = vmatpush.msra.mxu0 0.0
    %1159 = vmatpush.msra.mxu0 0.0
    %1160 = vmatpush.msra.mxu0 0.0
    %1161 = vmatpush.msra.mxu0 0.0
    %1162 = vmatpush.msra.mxu0 0.0
    %1163 = vmatpush.msra.mxu0 0.0
    %1164 = vmatpush.msra.mxu0 %v1144
    %1165 = vmatpush.msra.mxu0 %v1143
    %1166 = vmatpush.msra.mxu0 %v1142
    %1167 = vmatpush.msra.mxu0 %v1141
    %1168 = vmatmul.f32.gmra.mxu0 %v1150
    %v1169 = vpop.f32.mrf.mxu0
    %v1170 = vadd.f32 %v1147, %v1169
    %1171 = vdwg.mxu0
    %v1172 = vtanh.pop %v1170
    %v1173 = vld [vmem:[%s18] sm:$0xff]
    %v1174 = vld [vmem:[%s18 + $0x8] sm:$0xff]
    %v1175 = vld [vmem:[%s18 + $0x10] sm:$0xff]
    %v1176 = vld [vmem:[%s18 + $0x18] sm:$0xff]
    %v1177 = vld [vmem:[%s19] sm:$0x1]
    %v1179 = vperm.slane %v1177, 0
    %v1182 = vsel %vm72, %v1172, 0
    %1184 = vmatpush.msra.mxu0 0.0
    %1185 = vmatpush.msra.mxu0 0.0
    %1186 = vmatpush.msra.mxu0 0.0
    %1187 = vmatpush.msra.mxu0 0.0
    %1188 = vmatpush.msra.mxu0 0.0
    %1189 = vmatpush.msra.mxu0 0.0
    %1190 = vmatpush.msra.mxu0 0.0
    %1191 = vmatpush.msra.mxu0 0.0
    %1192 = vmatpush.msra.mxu0 0.0
    %1193 = vmatpush.msra.mxu0 0.0
    %1194 = vmatpush.msra.mxu0 0.0
    %1195 = vmatpush.msra.mxu0 0.0
    %1196 = vmatpush.msra.mxu0 %v1176
    %1197 = vmatpush.msra.mxu0 %v1175
    %1198 = vmatpush.msra.mxu0 %v1174
    %1199 = vmatpush.msra.mxu0 %v1173
    %1200 = vmatmul.f32.gmra.mxu0 %v1182
    %v1201 = vpop.f32.mrf.mxu0
    %v1202 = vadd.f32 %v1179, %v1201
    %1203 = vdwg.mxu0
    %1204 = vst [vmem:[#allocation2] sm:$0x3] %v1202
    // Predicated region
    $region82: #{bert_classifier_forward.1} parent=1 // pred_check
      _
    $region83: #{bert_classifier_forward.1} parent=1 // pred_check_branch
      %1206 = sbr.rel (0) target = $region85
    $region84: #{bert_classifier_forward.1} parent=1 // pred_region
      %1208 = vsyncadd [#allocation3], 0
      %s1210 = sshll.u32 [#allocation2], 4
      %s1211 = int_to_ptr.vmem [resolvable:$true] %s1210
      %s1212 = sshll.u32 %s20, 4
      %s1213 = int_to_ptr.hbm [resolvable:$true] %s1212
      %1215 = dma.vmem_to_hbm [thread:$0]  %s1211, 32, %s1213, [#allocation3]
    $region85: #{bert_classifier_forward.1} parent=1 // pred_fallthru
      _
    // Predicated region
    $region86: #{bert_classifier_forward.1} parent=1 // pred_check
      _
    $region87: #{bert_classifier_forward.1} parent=1 // pred_check_branch
      %1217 = sbr.rel (0) target = $region89
    $region88: #{bert_classifier_forward.1} parent=1 // pred_region
      %1219 = dma.done [#allocation3], 32
    $region89: #{bert_classifier_forward.1} parent=1 // pred_fallthru
      _
    %1220 = vsyncpa [#allocation3], 1

</llo_original>
